<compile_context>
chip_gen: v7x
topology: tpu7x:2x2x1
jax: 0.10.0
libtpu: 0.0.40
codegen_flags: <defaults>
</compile_context>

<pallas_src>
import functools
import math

import jax
import jax.numpy as jnp
from jax import lax
from jax.experimental import pallas as pl
from jax.experimental.pallas import tpu as pltpu

LANE = 128
SUBLANE = 8


def _round_up(x, m):
    return ((x + m - 1) // m) * m


def _pad_to(a, shape):
    pads = [(0, t - s) for s, t in zip(a.shape, shape)]
    if all(p == (0, 0) for p in pads):
        return a
    return jnp.pad(a, pads)


def _stable_softplus(x):
    # log(1 + exp(x)) in a numerically stable form; lowers to EUP exp/log1p.
    return jnp.maximum(x, 0.0) + jnp.log1p(jnp.exp(-jnp.abs(x)))


# -----------------------------------------------------------------------------
# Kernels
# -----------------------------------------------------------------------------
def _linear_kernel(x_ref, w_ref, b_ref, o_ref, *, relu):
    acc = jnp.dot(x_ref[...], w_ref[...], preferred_element_type=jnp.float32)
    acc = acc + b_ref[...]
    if relu:
        acc = jnp.maximum(acc, 0.0)
    o_ref[...] = acc.astype(o_ref.dtype)


def _mlp_head_kernel(x_ref, w1_ref, b1_ref, w2_ref, b2_ref,
                     wmu_ref, bmu_ref, ws_ref, bs_ref,
                     mu_ref, sig_ref):
    h1 = jnp.dot(x_ref[...], w1_ref[...], preferred_element_type=jnp.float32)
    h1 = jnp.maximum(h1 + b1_ref[...], 0.0).astype(w2_ref.dtype)
    h2 = jnp.dot(h1, w2_ref[...], preferred_element_type=jnp.float32)
    h2 = jnp.maximum(h2 + b2_ref[...], 0.0).astype(wmu_ref.dtype)
    mu = jnp.dot(h2, wmu_ref[...], preferred_element_type=jnp.float32) + bmu_ref[...]
    sr = jnp.dot(h2, ws_ref[...], preferred_element_type=jnp.float32) + bs_ref[...]
    sigma = _stable_softplus(sr) + 0.001
    mu_ref[...] = mu.astype(mu_ref.dtype)
    sig_ref[...] = sigma.astype(sig_ref.dtype)


# -----------------------------------------------------------------------------
# Wrappers
# -----------------------------------------------------------------------------
def _const_spec(shape, single_buffer):
    """BlockSpec for a grid-invariant (weight/bias) operand."""
    index_map = lambda i: tuple(0 for _ in shape)
    if single_buffer:
        # Constant index_map => a second pipeline buffer is pure VMEM waste.
        return pl.BlockSpec(shape, index_map, pipeline_mode=pl.Buffered(1))
    return pl.BlockSpec(shape, index_map)


def pallas_linear(x, w, b, *, relu, out_dtype=jnp.bfloat16, single_buffer_weights=True):
    """y = (x @ w + b), optional ReLU.  x:(R,K); w:(Kp,Np) bf16 lane-padded;
    b:(1,Np) f32.  Returns (R, Np) of out_dtype (caller slices real columns)."""
    R, K = x.shape
    Kp, Np = w.shape

    # MXU-aligned 256-row tiles for large problems; one lane/sublane-aligned
    # tile otherwise (per-grid-step overhead dominates at tiny sizes).
    if R >= 512:
        tr = 256
    else:
        tr = _round_up(max(R, SUBLANE), SUBLANE)
    Rp = _round_up(R, tr)
    x_p = _pad_to(x.astype(w.dtype), (Rp, Kp))

    grid = (Rp // tr,)
    flops = 2 * Rp * Kp * Np
    bytes_accessed = (x_p.size * x_p.dtype.itemsize
                      + w.size * w.dtype.itemsize
                      + b.size * b.dtype.itemsize
                      + Rp * Np * jnp.dtype(out_dtype).itemsize)

    out = pl.pallas_call(
        functools.partial(_linear_kernel, relu=relu),
        out_shape=jax.ShapeDtypeStruct((Rp, Np), out_dtype),
        grid_spec=pltpu.PrefetchScalarGridSpec(
            num_scalar_prefetch=0,
            grid=grid,
            in_specs=[
                pl.BlockSpec((tr, Kp), lambda i: (i, 0)),
                _const_spec((Kp, Np), single_buffer_weights),
                _const_spec((1, Np), single_buffer_weights),
            ],
            out_specs=pl.BlockSpec((tr, Np), lambda i: (i, 0)),
        ),
        compiler_params=pltpu.CompilerParams(
            dimension_semantics=("parallel",),
            vmem_limit_bytes=64 * 1024 * 1024,
        ),
        cost_estimate=pl.CostEstimate(flops=flops, transcendentals=0,
                                      bytes_accessed=bytes_accessed),
    )(x_p, w, b)
    return out[:R]


def _im2col(x, ksize, stride):
    """x:(B,H,W,C) -> patches (B*OH*OW, ksize*ksize*C), feature order (kh,kw,c)."""
    B, H, W, C = x.shape
    OH = (H - ksize) // stride + 1
    OW = (W - ksize) // stride + 1
    cols = []
    for di in range(ksize):
        for dj in range(ksize):
            patch = lax.slice(
                x,
                (0, di, dj, 0),
                (B, di + stride * (OH - 1) + 1, dj + stride * (OW - 1) + 1, C),
                (1, stride, stride, 1),
            )
            cols.append(patch)
    patches = jnp.concatenate(cols, axis=-1)  # (B, OH, OW, k*k*C)
    return patches.reshape(B * OH * OW, ksize * ksize * C), (B, OH, OW)


def pallas_conv2d(x, w, b, cout, *, ksize=4, stride=2, single_buffer_weights=True):
    """VALID conv (kernel 4, stride 2) + bias + ReLU via im2col + Pallas matmul."""
    patches, (B, OH, OW) = _im2col(x, ksize, stride)
    y = pallas_linear(patches, w, b, relu=True, out_dtype=jnp.bfloat16,
                      single_buffer_weights=single_buffer_weights)
    return y[:, :cout].reshape(B, OH, OW, cout)


def pallas_mlp_head(x, kp, *, single_buffer_weights=True):
    """Fused linear1+ReLU, linear2+ReLU, mu head, softplus(sigma head)+1e-3."""
    w1, b1 = kp["w1"], kp["b1"]
    w2, b2 = kp["w2"], kp["b2"]
    wmu, bmu = kp["wmu"], kp["bmu"]
    ws, bs = kp["wsig"], kp["bsig"]

    B, _ = x.shape
    Dp, Lp = w1.shape
    Zp = wmu.shape[1]

    if B >= 512:
        tb = 256
    else:
        tb = _round_up(max(B, SUBLANE), SUBLANE)
    Bp = _round_up(B, tb)
    x_p = _pad_to(x.astype(w1.dtype), (Bp, Dp))

    grid = (Bp // tb,)
    flops = 2 * Bp * (Dp * Lp + Lp * Lp + 2 * Lp * Zp)
    transcendentals = 2 * Bp * Zp
    bytes_accessed = (x_p.size * 2
                      + (w1.size + w2.size + wmu.size + ws.size) * 2
                      + (b1.size + b2.size + bmu.size + bs.size) * 4
                      + 2 * Bp * Zp * 4)

    const = lambda shape: _const_spec(shape, single_buffer_weights)
    mu, sigma = pl.pallas_call(
        _mlp_head_kernel,
        out_shape=(jax.ShapeDtypeStruct((Bp, Zp), jnp.float32),
                   jax.ShapeDtypeStruct((Bp, Zp), jnp.float32)),
        grid_spec=pltpu.PrefetchScalarGridSpec(
            num_scalar_prefetch=0,
            grid=grid,
            in_specs=[
                pl.BlockSpec((tb, Dp), lambda i: (i, 0)),
                const((Dp, Lp)), const((1, Lp)),
                const((Lp, Lp)), const((1, Lp)),
                const((Lp, Zp)), const((1, Zp)),
                const((Lp, Zp)), const((1, Zp)),
            ],
            out_specs=(pl.BlockSpec((tb, Zp), lambda i: (i, 0)),
                       pl.BlockSpec((tb, Zp), lambda i: (i, 0))),
        ),
        compiler_params=pltpu.CompilerParams(
            dimension_semantics=("parallel",),
            vmem_limit_bytes=64 * 1024 * 1024,
        ),
        cost_estimate=pl.CostEstimate(flops=flops, transcendentals=transcendentals,
                                      bytes_accessed=bytes_accessed),
    )(x_p, w1, b1, w2, b2, wmu, bmu, ws, bs)
    return mu[:B], sigma[:B]


def encoder_forward(o, h, kp, latent_size, *, single_buffer_weights=True):
    """o: (B,64,64,3) f32, h: (B,hidden) f32 -> (mu, sigma), each (B, latent)."""
    B = o.shape[0]
    x = o.astype(jnp.bfloat16)
    for li in range(1, 5):
        x = pallas_conv2d(x, kp[f"conv{li}_w"], kp[f"conv{li}_b"], kp[f"conv{li}_cout"],
                          single_buffer_weights=single_buffer_weights)
    # PyTorch flattens the NCHW tensor: (B, C, H, W) -> (B, C*H*W).
    flat = jnp.transpose(x, (0, 3, 1, 2)).reshape(B, -1)
    z = jnp.concatenate([h.astype(jnp.bfloat16), flat], axis=1)  # torch.cat((h, o), 1)
    mu_p, sigma_p = pallas_mlp_head(z, kp, single_buffer_weights=single_buffer_weights)
    return mu_p[:, :latent_size], sigma_p[:, :latent_size]


# -----------------------------------------------------------------------------
# Parameters (PyTorch-default init) + kernel-side padded/bf16 copies
# -----------------------------------------------------------------------------
def init_params(key, hidden_size, latent_size, layer_size):
    conv_channels = [(3, 32), (32, 64), (64, 128), (128, 256)]
    keys = jax.random.split(key, 2 * len(conv_channels) + 8)
    p = {}
    ki = 0
    for li, (cin, cout) in enumerate(conv_channels, start=1):
        bound = 1.0 / math.sqrt(cin * 4 * 4)
        p[f"conv{li}_w"] = jax.random.uniform(keys[ki], (4, 4, cin, cout),
                                              jnp.float32, -bound, bound); ki += 1
        p[f"conv{li}_b"] = jax.random.uniform(keys[ki], (cout,),
                                              jnp.float32, -bound, bound); ki += 1
    dense_dims = [("lin1", 2 * 2 * 256 + hidden_size, layer_size),
                  ("lin2", layer_size, layer_size),
                  ("mu", layer_size, latent_size),
                  ("sigma", layer_size, latent_size)]
    for name, fin, fout in dense_dims:
        bound = 1.0 / math.sqrt(fin)
        p[f"{name}_w"] = jax.random.uniform(keys[ki], (fin, fout),
                                            jnp.float32, -bound, bound); ki += 1
        p[f"{name}_b"] = jax.random.uniform(keys[ki], (fout,),
                                            jnp.float32, -bound, bound); ki += 1
    return p


def prepare_kernel_params(p):
    """Pad feature dims to multiples of 128 (once), cast weights to bf16."""
    kp = {}
    for li in range(1, 5):
        w = p[f"conv{li}_w"]                                # HWIO (4,4,cin,cout)
        kh, kw, cin, cout = w.shape
        wm = w.reshape(kh * kw * cin, cout)                 # matches im2col (kh,kw,c)
        kp[f"conv{li}_w"] = _pad_to(
            wm, (_round_up(wm.shape[0], LANE), _round_up(cout, LANE))).astype(jnp.bfloat16)
        kp[f"conv{li}_b"] = _pad_to(
            p[f"conv{li}_b"].reshape(1, -1), (1, _round_up(cout, LANE))).astype(jnp.float32)
        kp[f"conv{li}_cout"] = cout

    def dense(name):
        w, b = p[f"{name}_w"], p[f"{name}_b"]
        fin, fout = w.shape
        wp = _pad_to(w, (_round_up(fin, LANE), _round_up(fout, LANE))).astype(jnp.bfloat16)
        bp = _pad_to(b.reshape(1, -1), (1, _round_up(fout, LANE))).astype(jnp.float32)
        return wp, bp

    kp["w1"], kp["b1"] = dense("lin1")
    kp["w2"], kp["b2"] = dense("lin2")
    kp["wmu"], kp["bmu"] = dense("mu")
    kp["wsig"], kp["bsig"] = dense("sigma")
    return kp


# -----------------------------------------------------------------------------
# Pure-JAX reference (mirrors the kernel's bf16-operand / f32-accumulate math)
# -----------------------------------------------------------------------------
def reference_forward(o, h, p, latent_size):
    bf16, f32 = jnp.bfloat16, jnp.float32
    x = o.astype(bf16)
    for li in range(1, 5):
        y = lax.conv_general_dilated(
            x, p[f"conv{li}_w"].astype(bf16), window_strides=(2, 2), padding="VALID",
            dimension_numbers=("NHWC", "HWIO", "NHWC"), preferred_element_type=f32)
        x = jnp.maximum(y + p[f"conv{li}_b"], 0.0).astype(bf16)
    B = o.shape[0]
    flat = jnp.transpose(x, (0, 3, 1, 2)).reshape(B, -1)
    z = jnp.concatenate([h.astype(bf16), flat], axis=1)

    def lin(xv, name, relu):
        y = jnp.dot(xv, p[f"{name}_w"].astype(bf16), preferred_element_type=f32) + p[f"{name}_b"]
        return jnp.maximum(y, 0.0).astype(bf16) if relu else y

    h1 = lin(z, "lin1", True)
    h2 = lin(h1, "lin2", True)
    mu = lin(h2, "mu", False)
    sigma = _stable_softplus(lin(h2, "sigma", False)) + 0.001
    return mu, sigma


if __name__ == "__main__":
    key = jax.random.PRNGKey(0)
    k_o, k_h, k_p = jax.random.split(key, 3)

    batch = 2
    hidden_size = 32
    latent_size = 16
    layer_size = 64

    o = jax.random.normal(k_o, (batch, 64, 64, 3), jnp.float32)
    h = jax.random.normal(k_h, (batch, hidden_size), jnp.float32)

    params = init_params(k_p, hidden_size, latent_size, layer_size)
    kparams = prepare_kernel_params(params)

    try:
        mu, sigma = encoder_forward(o, h, kparams, latent_size, single_buffer_weights=True)
        mu, sigma = jax.block_until_ready((mu, sigma))
    except Exception:
        # pipeline_mode=pl.Buffered(1) unsupported on this jax build: default buffering.
        mu, sigma = encoder_forward(o, h, kparams, latent_size, single_buffer_weights=False)
        mu, sigma = jax.block_until_ready((mu, sigma))

    mu_ref, sigma_ref = reference_forward(o, h, params, latent_size)

    assert mu.shape == (batch, latent_size)
    assert sigma.shape == (batch, latent_size)
    assert bool(jnp.all(sigma > 0.0)), "sigma must be strictly positive"
    assert jnp.allclose(mu, mu_ref, atol=1e-2, rtol=1e-2), "mu mismatch vs reference"
    assert jnp.allclose(sigma, sigma_ref, atol=1e-2, rtol=1e-2), "sigma mismatch vs reference"

    print("KERNEL_OK")
</pallas_src>

<mosaic_0001>
module attributes {stable_mosaic.version = 11 : i64} {
  func.func @_linear_kernel(%arg0: i32, %arg1: memref<256x128xbf16, #tpu.memory_space<vmem>>, %arg2: memref<128x128xbf16, #tpu.memory_space<vmem>>, %arg3: memref<1x128xf32, #tpu.memory_space<vmem>>, %arg4: memref<256x128xbf16, #tpu.memory_space<vmem>>) attributes {dimension_semantics = [#tpu.dimension_semantics<parallel>], iteration_bounds = array<i64: 8>, scalar_prefetch = 0 : i64, scratch_operands = 0 : i64, tpu.core_type = #tpu.core_type<tc>, window_params = [{transform_indices = @transform_0, window_bounds = array<i64: 256, 128>}, {pipeline_mode = #tpu.pipeline_mode<synchronous>, transform_indices = @transform_1, window_bounds = array<i64: 128, 128>}, {pipeline_mode = #tpu.pipeline_mode<synchronous>, transform_indices = @transform_2, window_bounds = array<i64: 1, 128>}, {transform_indices = @transform_3, window_bounds = array<i64: 256, 128>}]} {
    %c0 = arith.constant 0 : index
    %c0_0 = arith.constant 0 : index
    %0 = vector.load %arg1[%c0, %c0_0] : memref<256x128xbf16, #tpu.memory_space<vmem>>, vector<256x128xbf16>
    %c0_1 = arith.constant 0 : index
    %c0_2 = arith.constant 0 : index
    %1 = vector.load %arg2[%c0_1, %c0_2] : memref<128x128xbf16, #tpu.memory_space<vmem>>, vector<128x128xbf16>
    %cst = arith.constant dense<0.000000e+00> : vector<256x128xf32>
    %2 = tpu.matmul %0, %1, %cst {dimension_numbers = #tpu.dot_dimension_numbers<[1], [0], [0], [1], [0, 0, 1, 1], [], []>} : vector<256x128xbf16>, vector<128x128xbf16>, vector<256x128xf32> -> vector<256x128xf32>
    %c0_3 = arith.constant 0 : index
    %c0_4 = arith.constant 0 : index
    %3 = vector.load %arg3[%c0_3, %c0_4] : memref<1x128xf32, #tpu.memory_space<vmem>>, vector<1x128xf32>
    %4 = vector.broadcast %3 : vector<1x128xf32> to vector<256x128xf32>
    %5 = arith.addf %2, %4 : vector<256x128xf32>
    %cst_5 = arith.constant 0.000000e+00 : f32
    %6 = vector.broadcast %cst_5 : f32 to vector<256x128xf32>
    %7 = arith.maximumf %5, %6 : vector<256x128xf32>
    %8 = arith.truncf %7 : vector<256x128xf32> to vector<256x128xbf16>
    %c0_6 = arith.constant 0 : index
    %c0_7 = arith.constant 0 : index
    %9 = vector.load %arg4[%c0_6, %c0_7] : memref<256x128xbf16, #tpu.memory_space<vmem>>, vector<256x128xbf16>
    tpu.vector_store %arg4[%c0_6, %c0_7], %8 {strides = array<i32>} : memref<256x128xbf16, #tpu.memory_space<vmem>>, vector<256x128xbf16>,
    return
  }
  func.func @transform_0(%arg0: i32) -> (i32, i32) {
    %c0_i32 = arith.constant 0 : i32
    %c0_i32_0 = arith.constant 0 : i32
    return %arg0, %c0_i32 : i32, i32
  }
  func.func @transform_1(%arg0: i32) -> (i32, i32) {
    %c0_i32 = arith.constant 0 : i32
    %c0_i32_0 = arith.constant 0 : i32
    %c0_i32_1 = arith.constant 0 : i32
    return %c0_i32, %c0_i32_0 : i32, i32
  }
  func.func @transform_2(%arg0: i32) -> (i32, i32) {
    %c0_i32 = arith.constant 0 : i32
    %c0_i32_0 = arith.constant 0 : i32
    %c0_i32_1 = arith.constant 0 : i32
    return %c0_i32, %c0_i32_0 : i32, i32
  }
  func.func @transform_3(%arg0: i32) -> (i32, i32) {
    %c0_i32 = arith.constant 0 : i32
    %c0_i32_0 = arith.constant 0 : i32
    return %arg0, %c0_i32 : i32, i32
  }
}

module attributes {stable_mosaic.version = 11 : i64} {
  func.func @_linear_kernel(%arg0: i32, %arg1: memref<256x128xbf16, #tpu.memory_space<vmem>>, %arg2: memref<128x128xbf16, #tpu.memory_space<vmem>>, %arg3: memref<1x128xf32, #tpu.memory_space<vmem>>, %arg4: memref<256x128xbf16, #tpu.memory_space<vmem>>) attributes {dimension_semantics = [#tpu.dimension_semantics<parallel>], iteration_bounds = array<i64: 8>, scalar_prefetch = 0 : i64, scratch_operands = 0 : i64, tpu.core_type = #tpu.core_type<tc>, window_params = [{transform_indices = @transform_0, window_bounds = array<i64: 256, 128>}, {pipeline_mode = #tpu.pipeline_mode<synchronous>, transform_indices = @transform_1, window_bounds = array<i64: 128, 128>}, {pipeline_mode = #tpu.pipeline_mode<synchronous>, transform_indices = @transform_2, window_bounds = array<i64: 1, 128>}, {transform_indices = @transform_3, window_bounds = array<i64: 256, 128>}]} {
    %c0 = arith.constant 0 : index
    %c0_0 = arith.constant 0 : index
    %0 = vector.load %arg1[%c0, %c0_0] : memref<256x128xbf16, #tpu.memory_space<vmem>>, vector<256x128xbf16>
    %c0_1 = arith.constant 0 : index
    %c0_2 = arith.constant 0 : index
    %1 = vector.load %arg2[%c0_1, %c0_2] : memref<128x128xbf16, #tpu.memory_space<vmem>>, vector<128x128xbf16>
    %cst = arith.constant dense<0.000000e+00> : vector<256x128xf32>
    %2 = tpu.matmul %0, %1, %cst {dimension_numbers = #tpu.dot_dimension_numbers<[1], [0], [0], [1], [0, 0, 1, 1], [], []>} : vector<256x128xbf16>, vector<128x128xbf16>, vector<256x128xf32> -> vector<256x128xf32>
    %c0_3 = arith.constant 0 : index
    %c0_4 = arith.constant 0 : index
    %3 = vector.load %arg3[%c0_3, %c0_4] : memref<1x128xf32, #tpu.memory_space<vmem>>, vector<1x128xf32>
    %4 = vector.broadcast %3 : vector<1x128xf32> to vector<256x128xf32>
    %5 = arith.addf %2, %4 : vector<256x128xf32>
    %cst_5 = arith.constant 0.000000e+00 : f32
    %6 = vector.broadcast %cst_5 : f32 to vector<256x128xf32>
    %7 = arith.maximumf %5, %6 : vector<256x128xf32>
    %8 = arith.truncf %7 : vector<256x128xf32> to vector<256x128xbf16>
    %c0_6 = arith.constant 0 : index
    %c0_7 = arith.constant 0 : index
    %9 = vector.load %arg4[%c0_6, %c0_7] : memref<256x128xbf16, #tpu.memory_space<vmem>>, vector<256x128xbf16>
    tpu.vector_store %arg4[%c0_6, %c0_7], %8 {strides = array<i32>} : memref<256x128xbf16, #tpu.memory_space<vmem>>, vector<256x128xbf16>,
    return
  }
  func.func @transform_0(%arg0: i32) -> (i32, i32) {
    %c0_i32 = arith.constant 0 : i32
    %c0_i32_0 = arith.constant 0 : i32
    return %arg0, %c0_i32 : i32, i32
  }
  func.func @transform_1(%arg0: i32) -> (i32, i32) {
    %c0_i32 = arith.constant 0 : i32
    %c0_i32_0 = arith.constant 0 : i32
    %c0_i32_1 = arith.constant 0 : i32
    return %c0_i32, %c0_i32_0 : i32, i32
  }
  func.func @transform_2(%arg0: i32) -> (i32, i32) {
    %c0_i32 = arith.constant 0 : i32
    %c0_i32_0 = arith.constant 0 : i32
    %c0_i32_1 = arith.constant 0 : i32
    return %c0_i32, %c0_i32_0 : i32, i32
  }
  func.func @transform_3(%arg0: i32) -> (i32, i32) {
    %c0_i32 = arith.constant 0 : i32
    %c0_i32_0 = arith.constant 0 : i32
    return %arg0, %c0_i32 : i32, i32
  }
}

</mosaic_0001>

<llo_original>
// kernel: tpu_custom_call.1
$region0: #{tpu_custom_call.1}
  #allocation0 [shape = 'u32[]', space=smem, size = 0x4, offset = 0x4, fixed_abs, tag = 'smem constant byte address 0x4 - core index']
  #allocation1 [shape = 'u32[144,128]{1,0:T(1,128)}', space=vmem, size = 0x12000, scoped, tag = 'internal scratch']
  %s0 = inlined_call_operand.hbm [shape: bf16[2048,128], index: 0, kind: input, shape index: {}]
  %s1 = inlined_call_operand.hbm [shape: bf16[128,128], index: 1, kind: input, shape index: {}]
  %s2 = inlined_call_operand.hbm [shape: f32[1,128], index: 2, kind: input, shape index: {}]
  %s3 = inlined_call_operand.hbm [shape: bf16[2048,128], index: 3, kind: output, shape index: {}]
  %s4 = sld [smem:[#allocation0]]
  $region57: #{tpu_custom_call.1} parent=0
    _
  %s6 = ssub.s32 1, %s4
  %s7 = scalar_select 0, %s6, %s4
  $region1: #{tpu_custom_call.1} parent=0
    #allocation2 [shape = 'u8[131072]{0}', space=vmem, size = 0x20000, scoped, tag = 'input window, operand 0']
    #allocation3 [shape = 's32[2]{0}', space=sflag, size = 0x8, scoped, tag = 'scoped memory for tpu_custom_call.1']
    #allocation4 [shape = 's32[2]{0}', space=sflag, size = 0x8, scoped, tag = 'scoped memory for tpu_custom_call.1']
    #allocation5 [shape = 'u8[32768]{0}', space=vmem, size = 0x8000, scoped, tag = 'input window, operand 1, single buffered']
    #allocation6 [shape = 's32[1]{0}', space=sflag, size = 0x4, scoped, tag = 'scoped memory for tpu_custom_call.1']
    #allocation7 [shape = 'u8[512]{0}', space=vmem, size = 0x400, scoped, tag = 'input window, operand 2, single buffered']
    #allocation8 [shape = 'u8[131072]{0}', space=vmem, size = 0x20000, scoped, tag = 'output window, operand 0']
    %8 = vsyncpa [#allocation3], 0
    %s9 = scalar_lea.sflag [#allocation3], 1
    %10 = vsyncpa %s9, 0
    %11 = vsyncpa [#allocation6], 0
    %12 = vsyncpa [#allocation4], 0
    %s13 = scalar_lea.sflag [#allocation4], 1
    %14 = vsyncpa %s13, 0
    loop: start=0, step=1, limit=10
    $region2: #{tpu_custom_call.1} parent=1 // loop_pre_header
      _
    $region3: #{tpu_custom_call.1} parent=1 // loop_header
      %s16 = sphi 0, %s20
      %p17 = scmp.ge.s32.totalorder %s16, 10
      %s26 = sphi 0, %s28
      %s29 = sphi 0, %s26
      %s30 = sphi 0, %s29
      %s46 = sphi 0, %s30
      %s50 = sphi 0, %s50
      %s52 = sphi 0, %s50
      %s53 = sphi 0, %s52
      %s67 = sphi 0, %s53
      %s71 = sphi 0, %s71
      %s73 = sphi 0, %s71
      %s74 = sphi 0, %s73
      %s88 = sphi 0, %s74
      %s94 = sphi 0, %s96
      %s97 = sphi 0, %s94
      %s98 = sphi 0, %s97
      %s114 = sphi 0, %s98
    $region4: #{tpu_custom_call.1} parent=1 // loop_header_branch
      %19 = sbr.rel (%p17) target = $region8
    $region5: #{tpu_custom_call.1} parent=1 // loop_body
      %s21 = ssub.s32 %s16, 1
      %s22 = ssub.s32 %s16, 2
      %s23 = sadd.s32 %s16, 1
      %s24 = ssub.s32 %s16, %s23
      %p25 = scmp.eq.s32.totalorder %s24, 0
      %s27 = sadd.s32 %s26, 1
      %s28 = scalar_select %p25, %s26, %s27
      %p31 = pneg %p25
      %p32 = scmp.eq.s32.totalorder %s16, 7
      %p33 = por %p31, %p32
      %p34 = scmp.ne.s32.totalorder %s26, %s29
      %p35 = scmp.eq.s32.totalorder %s16, 0
      %p36 = por %p34, %p35
      %p37 = scmp.ne.s32.totalorder %s26, %s29
      %p38 = scmp.eq.s32.totalorder %s21, 7
      %p39 = por %p37, %p38
      %p40 = scmp.ne.s32.totalorder %s29, %s30
      %p41 = scmp.eq.s32.totalorder %s21, 0
      %p42 = por %p40, %p41
      %p43 = scmp.ne.s32.totalorder %s29, %s30
      %p44 = scmp.eq.s32.totalorder %s22, 7
      %p45 = por %p43, %p44
      %p47 = scmp.ne.s32.totalorder %s30, %s46
      %p48 = scmp.eq.s32.totalorder %s22, 0
      %p49 = por %p47, %p48
      %s51 = sadd.s32 %s50, 1
      %p54 = scmp.eq.s32.totalorder %s16, 7
      %p55 = scmp.ne.s32.totalorder %s50, %s52
      %p56 = scmp.eq.s32.totalorder %s16, 0
      %p57 = por %p55, %p56
      %p58 = scmp.ne.s32.totalorder %s50, %s52
      %p59 = scmp.eq.s32.totalorder %s21, 7
      %p60 = por %p58, %p59
      %p61 = scmp.ne.s32.totalorder %s52, %s53
      %p62 = scmp.eq.s32.totalorder %s21, 0
      %p63 = por %p61, %p62
      %p64 = scmp.ne.s32.totalorder %s52, %s53
      %p65 = scmp.eq.s32.totalorder %s22, 7
      %p66 = por %p64, %p65
      %p68 = scmp.ne.s32.totalorder %s53, %s67
      %p69 = scmp.eq.s32.totalorder %s22, 0
      %p70 = por %p68, %p69
      %s72 = sadd.s32 %s71, 1
      %p75 = scmp.eq.s32.totalorder %s16, 7
      %p76 = scmp.ne.s32.totalorder %s71, %s73
      %p77 = scmp.eq.s32.totalorder %s16, 0
      %p78 = por %p76, %p77
      %p79 = scmp.ne.s32.totalorder %s71, %s73
      %p80 = scmp.eq.s32.totalorder %s21, 7
      %p81 = por %p79, %p80
      %p82 = scmp.ne.s32.totalorder %s73, %s74
      %p83 = scmp.eq.s32.totalorder %s21, 0
      %p84 = por %p82, %p83
      %p85 = scmp.ne.s32.totalorder %s73, %s74
      %p86 = scmp.eq.s32.totalorder %s22, 7
      %p87 = por %p85, %p86
      %p89 = scmp.ne.s32.totalorder %s74, %s88
      %p90 = scmp.eq.s32.totalorder %s22, 0
      %p91 = por %p89, %p90
      %s92 = ssub.s32 %s16, %s23
      %p93 = scmp.eq.s32.totalorder %s92, 0
      %s95 = sadd.s32 %s94, 1
      %s96 = scalar_select %p93, %s94, %s95
      %p99 = pneg %p93
      %p100 = scmp.eq.s32.totalorder %s16, 7
      %p101 = por %p99, %p100
      %p102 = scmp.ne.s32.totalorder %s94, %s97
      %p103 = scmp.eq.s32.totalorder %s16, 0
      %p104 = por %p102, %p103
      %p105 = scmp.ne.s32.totalorder %s94, %s97
      %p106 = scmp.eq.s32.totalorder %s21, 7
      %p107 = por %p105, %p106
      %p108 = scmp.ne.s32.totalorder %s97, %s98
      %p109 = scmp.eq.s32.totalorder %s21, 0
      %p110 = por %p108, %p109
      %p111 = scmp.ne.s32.totalorder %s97, %s98
      %p112 = scmp.eq.s32.totalorder %s22, 7
      %p113 = por %p111, %p112
      %p115 = scmp.ne.s32.totalorder %s98, %s114
      %p116 = scmp.eq.s32.totalorder %s22, 0
      %p117 = por %p115, %p116
      %p118 = scmp.le.s32.totalorder 1, %s16
      %p119 = scmp.lt.s32.totalorder %s16, 9
      %p120 = pnand %p118, %p119
      %p121 = pneg %p120
      // Predicated region
      $region9: #{tpu_custom_call.1} parent=5 // pred_check
        _
      $region10: #{tpu_custom_call.1} parent=5 // pred_check_branch
        %123 = sbr.rel (%p120) target = $region12
      $region11: #{tpu_custom_call.1} parent=5 // pred_region
        %s124 = ssub.s32 %s16, 1
        // Predicated region
        $region13: #{tpu_custom_call.1} parent=11 // pred_check
          %p125 = pneg %p63
        $region14: #{tpu_custom_call.1} parent=11 // pred_check_branch
          %127 = sbr.rel (%p125) target = $region16
        $region15: #{tpu_custom_call.1} parent=11 // pred_region
          %s129 = ssub.s32 1024, 1024
          %130 = vsyncadd [#allocation6], %s129
          %s131 = sshll.u32 [#allocation5], 4
          %s132 = int_to_ptr.vmem [resolvable:$true] %s131
          %137 = dma.hbm_to_vmem [thread:$0]  %s1, 1024, %s132, [#allocation6], 64, 64, 4
        $region16: #{tpu_custom_call.1} parent=11 // pred_fallthru
          _
        // Predicated region
        $region17: #{tpu_custom_call.1} parent=11 // pred_check
          %p138 = pneg %p84
        $region18: #{tpu_custom_call.1} parent=11 // pred_check_branch
          %140 = sbr.rel (%p138) target = $region20
        $region19: #{tpu_custom_call.1} parent=11 // pred_region
          %s142 = ssub.s32 16, 16
          %143 = vsyncadd [#allocation6], %s142
          %s145 = sshll.u32 [#allocation7], 4
          %s146 = int_to_ptr.vmem [resolvable:$true] %s145
          %148 = dma.hbm_to_vmem [thread:$0]  %s2, 16, %s146, [#allocation6]
        $region20: #{tpu_custom_call.1} parent=11 // pred_fallthru
          _
      $region12: #{tpu_custom_call.1} parent=5 // pred_fallthru
        _
      %p149 = scmp.lt.s32.totalorder %s16, 8
      // Predicated region
      $region21: #{tpu_custom_call.1} parent=5 // pred_check
        %p150 = pneg %p149
      $region22: #{tpu_custom_call.1} parent=5 // pred_check_branch
        %152 = sbr.rel (%p150) target = $region24
      $region23: #{tpu_custom_call.1} parent=5 // pred_region
        // Predicated region
        $region25: #{tpu_custom_call.1} parent=23 // pred_check
          %p153 = pneg %p36
        $region26: #{tpu_custom_call.1} parent=23 // pred_check_branch
          %155 = sbr.rel (%p153) target = $region28
        $region27: #{tpu_custom_call.1} parent=23 // pred_region
          %s156 = sand.u32 %s26, 1
          %s157 = scalar_lea.sflag [#allocation3], %s156
          %s158 = sand.u32 %s26, 1
          %s159 = smul.addr %s158, 128
          %s160 = scalar_lea.vmem [#allocation2], %s159
          %s161 = smul.u32 32, %s16
          %s163 = ssub.s32 2048, 2048
          %164 = vsyncadd %s157, %s163
          %s165 = smul.addr %s161, 64
          %s166 = scalar_lea.hbm %s0, %s165
          %s167 = sshll.u32 %s160, 4
          %s168 = int_to_ptr.vmem [resolvable:$true] %s167
          %173 = dma.hbm_to_vmem [thread:$0]  %s166, 2048, %s168, %s157, 64, 64, 4
        $region28: #{tpu_custom_call.1} parent=23 // pred_fallthru
          _
      $region24: #{tpu_custom_call.1} parent=5 // pred_fallthru
        _
      %p174 = scmp.le.s32.totalorder 1, %s16
      %p175 = scmp.lt.s32.totalorder %s16, 9
      %p176 = pnand %p174, %p175
      %p177 = pneg %p176
      // Predicated region
      $region29: #{tpu_custom_call.1} parent=5 // pred_check
        _
      $region30: #{tpu_custom_call.1} parent=5 // pred_check_branch
        %179 = sbr.rel (%p176) target = $region32
      $region31: #{tpu_custom_call.1} parent=5 // pred_region
        %s180 = ssub.s32 %s16, 1
        %s181 = sand.u32 %s29, 1
        %s182 = scalar_lea.sflag [#allocation3], %s181
        %s183 = sand.u32 %s29, 1
        %s184 = smul.addr %s183, 128
        %s185 = scalar_lea.vmem [#allocation2], %s184
        // Predicated region
        $region33: #{tpu_custom_call.1} parent=31 // pred_check
          %p186 = pneg %p42
        $region34: #{tpu_custom_call.1} parent=31 // pred_check_branch
          %188 = sbr.rel (%p186) target = $region36
        $region35: #{tpu_custom_call.1} parent=31 // pred_region
          %189 = dma.done %s182, 2048
        $region36: #{tpu_custom_call.1} parent=31 // pred_fallthru
          _
        // Predicated region
        $region37: #{tpu_custom_call.1} parent=31 // pred_check
          %p190 = pneg %p63
        $region38: #{tpu_custom_call.1} parent=31 // pred_check_branch
          %192 = sbr.rel (%p190) target = $region40
        $region39: #{tpu_custom_call.1} parent=31 // pred_region
          %193 = dma.done [#allocation6], 1024
        $region40: #{tpu_custom_call.1} parent=31 // pred_fallthru
          _
        // Predicated region
        $region41: #{tpu_custom_call.1} parent=31 // pred_check
          %p194 = pneg %p84
        $region42: #{tpu_custom_call.1} parent=31 // pred_check_branch
          %196 = sbr.rel (%p194) target = $region44
        $region43: #{tpu_custom_call.1} parent=31 // pred_region
          %197 = dma.done [#allocation6], 16
        $region44: #{tpu_custom_call.1} parent=31 // pred_fallthru
          _
        %s198 = sand.u32 %s29, 1
        %s199 = scalar_lea.sflag [#allocation3], %s198
        %s200 = sand.u32 %s29, 1
        %s201 = smul.addr %s200, 128
        %s202 = scalar_lea.vmem [#allocation2], %s201
        %p203 = pneg %p42
        %p204 = pneg %p39
        %p205 = pneg %p63
        %p206 = pneg %p60
        %p207 = pneg %p84
        %p208 = pneg %p81
        %p209 = pneg %p110
        %p210 = pneg %p107
        %s211 = sand.u32 %s97, 1
        %s212 = scalar_lea.sflag [#allocation4], %s211
        %s213 = sand.u32 %s97, 1
        %s214 = smul.addr %s213, 128
        %s215 = scalar_lea.vmem [#allocation8], %s214
        %s216 = smul.u32 32, %s21
        %s217 = smul.u32 32, %s21
        %v219 = vld [vmem:[%s185] sm:$0xf]
        %v220 = vld [vmem:[%s185 + $0x4] sm:$0xf]
        %v221 = vld [vmem:[%s185 + $0x8] sm:$0xf]
        %v222 = vld [vmem:[%s185 + $0xc] sm:$0xf]
        %v223 = vld [vmem:[%s185 + $0x10] sm:$0xf]
        %v224 = vld [vmem:[%s185 + $0x14] sm:$0xf]
        %v225 = vld [vmem:[%s185 + $0x18] sm:$0xf]
        %v226 = vld [vmem:[%s185 + $0x1c] sm:$0xf]
        %v227 = vld [vmem:[%s185 + $0x20] sm:$0xf]
        %v228 = vld [vmem:[%s185 + $0x24] sm:$0xf]
        %v229 = vld [vmem:[%s185 + $0x28] sm:$0xf]
        %v230 = vld [vmem:[%s185 + $0x2c] sm:$0xf]
        %v231 = vld [vmem:[%s185 + $0x30] sm:$0xf]
        %v232 = vld [vmem:[%s185 + $0x34] sm:$0xf]
        %v233 = vld [vmem:[%s185 + $0x38] sm:$0xf]
        %v234 = vld [vmem:[%s185 + $0x3c] sm:$0xf]
        %v235 = vld [vmem:[%s185 + $0x40] sm:$0xf]
        %v236 = vld [vmem:[%s185 + $0x44] sm:$0xf]
        %v237 = vld [vmem:[%s185 + $0x48] sm:$0xf]
        %v238 = vld [vmem:[%s185 + $0x4c] sm:$0xf]
        %v239 = vld [vmem:[%s185 + $0x50] sm:$0xf]
        %v240 = vld [vmem:[%s185 + $0x54] sm:$0xf]
        %v241 = vld [vmem:[%s185 + $0x58] sm:$0xf]
        %v242 = vld [vmem:[%s185 + $0x5c] sm:$0xf]
        %v243 = vld [vmem:[%s185 + $0x60] sm:$0xf]
        %v244 = vld [vmem:[%s185 + $0x64] sm:$0xf]
        %v245 = vld [vmem:[%s185 + $0x68] sm:$0xf]
        %v246 = vld [vmem:[%s185 + $0x6c] sm:$0xf]
        %v247 = vld [vmem:[%s185 + $0x70] sm:$0xf]
        %v248 = vld [vmem:[%s185 + $0x74] sm:$0xf]
        %v249 = vld [vmem:[%s185 + $0x78] sm:$0xf]
        %v250 = vld [vmem:[%s185 + $0x7c] sm:$0xf]
        %v251 = vld [vmem:[#allocation5] sm:$0xf]
        %v252 = vld [vmem:[#allocation5 + $0x4] sm:$0xf]
        %v253 = vld [vmem:[#allocation5 + $0x8] sm:$0xf]
        %v254 = vld [vmem:[#allocation5 + $0xc] sm:$0xf]
        %v255 = vld [vmem:[#allocation5 + $0x10] sm:$0xf]
        %v256 = vld [vmem:[#allocation5 + $0x14] sm:$0xf]
        %v257 = vld [vmem:[#allocation5 + $0x18] sm:$0xf]
        %v258 = vld [vmem:[#allocation5 + $0x1c] sm:$0xf]
        %v259 = vld [vmem:[#allocation5 + $0x20] sm:$0xf]
        %v260 = vld [vmem:[#allocation5 + $0x24] sm:$0xf]
        %v261 = vld [vmem:[#allocation5 + $0x28] sm:$0xf]
        %v262 = vld [vmem:[#allocation5 + $0x2c] sm:$0xf]
        %v263 = vld [vmem:[#allocation5 + $0x30] sm:$0xf]
        %v264 = vld [vmem:[#allocation5 + $0x34] sm:$0xf]
        %v265 = vld [vmem:[#allocation5 + $0x38] sm:$0xf]
        %v266 = vld [vmem:[#allocation5 + $0x3c] sm:$0xf]
        %v267 = vld [vmem:[#allocation7] sm:$0x1]
        %v269 = vlaneseq
        %v270 = vshrl.u32 %v269, 7
        %v271 = vsub.s32 0, %v270
        %v272 = vrot.slane %v267, %v271
        %v306 = vunpack.c.l.b16 %v219
        %v307 = vunpack.c.l.b16 %v220
        %v308 = vunpack.c.l.b16 %v221
        %v309 = vunpack.c.l.b16 %v222
        %v310 = vunpack.c.l.b16 %v223
        %v311 = vunpack.c.l.b16 %v224
        %v312 = vunpack.c.l.b16 %v225
        %v313 = vunpack.c.l.b16 %v226
        %v314 = vunpack.c.l.b16 %v227
        %v315 = vunpack.c.l.b16 %v228
        %v316 = vunpack.c.l.b16 %v229
        %v317 = vunpack.c.l.b16 %v230
        %v318 = vunpack.c.l.b16 %v231
        %v319 = vunpack.c.l.b16 %v232
        %v320 = vunpack.c.l.b16 %v233
        %v321 = vunpack.c.l.b16 %v234
        %v322 = vunpack.c.l.b16 %v235
        %v323 = vunpack.c.l.b16 %v236
        %v324 = vunpack.c.l.b16 %v237
        %v325 = vunpack.c.l.b16 %v238
        %v326 = vunpack.c.l.b16 %v239
        %v327 = vunpack.c.l.b16 %v240
        %v328 = vunpack.c.l.b16 %v241
        %v329 = vunpack.c.l.b16 %v242
        %v330 = vunpack.c.l.b16 %v243
        %v331 = vunpack.c.l.b16 %v244
        %v332 = vunpack.c.l.b16 %v245
        %v333 = vunpack.c.l.b16 %v246
        %v334 = vunpack.c.l.b16 %v247
        %v335 = vunpack.c.l.b16 %v248
        %v336 = vunpack.c.l.b16 %v249
        %v337 = vunpack.c.l.b16 %v250
        %v338 = vpack.c.b16 %v307, %v306
        %v339 = vpack.c.b16 %v309, %v308
        %v340 = vpack.c.b16 %v311, %v310
        %v341 = vpack.c.b16 %v313, %v312
        %v342 = vpack.c.b16 %v315, %v314
        %v343 = vpack.c.b16 %v317, %v316
        %v344 = vpack.c.b16 %v319, %v318
        %v345 = vpack.c.b16 %v321, %v320
        %v346 = vpack.c.b16 %v323, %v322
        %v347 = vpack.c.b16 %v325, %v324
        %v348 = vpack.c.b16 %v327, %v326
        %v349 = vpack.c.b16 %v329, %v328
        %v350 = vpack.c.b16 %v331, %v330
        %v351 = vpack.c.b16 %v333, %v332
        %v352 = vpack.c.b16 %v335, %v334
        %v353 = vpack.c.b16 %v337, %v336
        %v386 = vunpack.c.l.b16 %v251
        %v387 = vunpack.c.l.b16 %v252
        %v388 = vunpack.c.l.b16 %v253
        %v389 = vunpack.c.l.b16 %v254
        %v390 = vunpack.c.l.b16 %v255
        %v391 = vunpack.c.l.b16 %v256
        %v392 = vunpack.c.l.b16 %v257
        %v393 = vunpack.c.l.b16 %v258
        %v394 = vunpack.c.l.b16 %v259
        %v395 = vunpack.c.l.b16 %v260
        %v396 = vunpack.c.l.b16 %v261
        %v397 = vunpack.c.l.b16 %v262
        %v398 = vunpack.c.l.b16 %v263
        %v399 = vunpack.c.l.b16 %v264
        %v400 = vunpack.c.l.b16 %v265
        %v401 = vunpack.c.l.b16 %v266
        %v402 = vpack.c.b16 %v387, %v386
        %v403 = vpack.c.b16 %v389, %v388
        %v404 = vpack.c.b16 %v391, %v390
        %v405 = vpack.c.b16 %v393, %v392
        %v406 = vpack.c.b16 %v395, %v394
        %v407 = vpack.c.b16 %v397, %v396
        %v408 = vpack.c.b16 %v399, %v398
        %v409 = vpack.c.b16 %v401, %v400
        %418 = vmatprep.subr.bf16.mxu0 0
        %419 = vmatpush1.bf16.msra.mxu0 %v402
        %420 = vmatprep.subr.bf16.mxu0 0
        %421 = vmatpush1.bf16.msra.mxu0 %v403
        %422 = vmatprep.subr.bf16.mxu0 0
        %423 = vmatpush1.bf16.msra.mxu0 %v404
        %424 = vmatprep.subr.bf16.mxu0 0
        %425 = vmatpush1.bf16.msra.mxu0 %v405
        %426 = vmatprep.subr.bf16.mxu0 0
        %427 = vmatpush1.bf16.msra.mxu0 %v406
        %428 = vmatprep.subr.bf16.mxu0 0
        %429 = vmatpush1.bf16.msra.mxu0 %v407
        %430 = vmatprep.subr.bf16.mxu0 0
        %431 = vmatpush1.bf16.msra.mxu0 %v408
        %432 = vmatprep.subr.bf16.mxu0 0
        %433 = vmatpush1.bf16.msra.mxu0 %v409
        %434 = vmatprep.subr.bf16.mxu0 0
        %435 = vmatpush1.bf16.msra.mxu0 0
        %436 = vmatprep.subr.bf16.mxu0 0
        %437 = vmatpush1.bf16.msra.mxu0 0
        %438 = vmatprep.subr.bf16.mxu0 0
        %439 = vmatpush1.bf16.msra.mxu0 0
        %440 = vmatprep.subr.bf16.mxu0 0
        %441 = vmatpush1.bf16.msra.mxu0 0
        %442 = vmatprep.subr.bf16.mxu0 0
        %443 = vmatpush1.bf16.msra.mxu0 0
        %444 = vmatprep.subr.bf16.mxu0 0
        %445 = vmatpush1.bf16.msra.mxu0 0
        %446 = vmatprep.subr.bf16.mxu0 0
        %447 = vmatpush1.bf16.msra.mxu0 0
        %448 = vmatprep.subr.bf16.mxu0 0
        %449 = vmatpush1.bf16.msra.mxu0 0
        %450 = vmatprep.mubr.bf16.mxu0 0
        %451 = vmatmul.mubr.bf16.gmra.mrb[0].mxu0 %v338
        %v452 = vpop.f32.mrb[0].mxu0
        %v453 = vadd.f32 %v272, %v452
        %v454 = vpop.f32.mrb[0].mxu0
        %v455 = vpop.f32.mrb[0].mxu0
        %v456 = vadd.f32 %v272, %v455
        %v457 = vpop.f32.mrb[0].mxu0
        %458 = vmatprep.mubr.bf16.mxu0 0
        %459 = vmatmul.mubr.bf16.gmra.mrb[0].mxu0 %v339
        %v460 = vpop.f32.mrb[0].mxu0
        %v461 = vadd.f32 %v272, %v460
        %v462 = vpop.f32.mrb[0].mxu0
        %v463 = vpop.f32.mrb[0].mxu0
        %v464 = vadd.f32 %v272, %v463
        %v465 = vpop.f32.mrb[0].mxu0
        %466 = vmatprep.mubr.bf16.mxu0 0
        %467 = vmatmul.mubr.bf16.gmra.mrb[0].mxu0 %v340
        %v468 = vpop.f32.mrb[0].mxu0
        %v469 = vadd.f32 %v272, %v468
        %v470 = vpop.f32.mrb[0].mxu0
        %v471 = vpop.f32.mrb[0].mxu0
        %v472 = vadd.f32 %v272, %v471
        %v473 = vpop.f32.mrb[0].mxu0
        %474 = vmatprep.mubr.bf16.mxu0 0
        %475 = vmatmul.mubr.bf16.gmra.mrb[0].mxu0 %v341
        %v476 = vpop.f32.mrb[0].mxu0
        %v477 = vadd.f32 %v272, %v476
        %v478 = vpop.f32.mrb[0].mxu0
        %v479 = vpop.f32.mrb[0].mxu0
        %v480 = vadd.f32 %v272, %v479
        %v481 = vpop.f32.mrb[0].mxu0
        %482 = vmatprep.mubr.bf16.mxu0 0
        %483 = vmatmul.mubr.bf16.gmra.mrb[0].mxu0 %v342
        %v484 = vpop.f32.mrb[0].mxu0
        %v485 = vadd.f32 %v272, %v484
        %v486 = vpop.f32.mrb[0].mxu0
        %v487 = vpop.f32.mrb[0].mxu0
        %v488 = vadd.f32 %v272, %v487
        %v489 = vpop.f32.mrb[0].mxu0
        %490 = vmatprep.mubr.bf16.mxu0 0
        %491 = vmatmul.mubr.bf16.gmra.mrb[0].mxu0 %v343
        %v492 = vpop.f32.mrb[0].mxu0
        %v493 = vadd.f32 %v272, %v492
        %v494 = vpop.f32.mrb[0].mxu0
        %v495 = vpop.f32.mrb[0].mxu0
        %v496 = vadd.f32 %v272, %v495
        %v497 = vpop.f32.mrb[0].mxu0
        %498 = vmatprep.mubr.bf16.mxu0 0
        %499 = vmatmul.mubr.bf16.gmra.mrb[0].mxu0 %v344
        %v500 = vpop.f32.mrb[0].mxu0
        %v501 = vadd.f32 %v272, %v500
        %v502 = vpop.f32.mrb[0].mxu0
        %v503 = vpop.f32.mrb[0].mxu0
        %v504 = vadd.f32 %v272, %v503
        %v505 = vpop.f32.mrb[0].mxu0
        %506 = vmatprep.mubr.bf16.mxu0 0
        %507 = vmatmul.mubr.bf16.gmra.mrb[0].mxu0 %v345
        %v508 = vpop.f32.mrb[0].mxu0
        %v509 = vadd.f32 %v272, %v508
        %v510 = vpop.f32.mrb[0].mxu0
        %v511 = vpop.f32.mrb[0].mxu0
        %v512 = vadd.f32 %v272, %v511
        %v513 = vpop.f32.mrb[0].mxu0
        %514 = vmatprep.mubr.bf16.mxu0 0
        %515 = vmatmul.mubr.bf16.gmra.mrb[0].mxu0 %v346
        %v516 = vpop.f32.mrb[0].mxu0
        %v517 = vadd.f32 %v272, %v516
        %v518 = vpop.f32.mrb[0].mxu0
        %v519 = vpop.f32.mrb[0].mxu0
        %v520 = vadd.f32 %v272, %v519
        %v521 = vpop.f32.mrb[0].mxu0
        %522 = vmatprep.mubr.bf16.mxu0 0
        %523 = vmatmul.mubr.bf16.gmra.mrb[0].mxu0 %v347
        %v524 = vpop.f32.mrb[0].mxu0
        %v525 = vadd.f32 %v272, %v524
        %v526 = vpop.f32.mrb[0].mxu0
        %v527 = vpop.f32.mrb[0].mxu0
        %v528 = vadd.f32 %v272, %v527
        %v529 = vpop.f32.mrb[0].mxu0
        %530 = vmatprep.mubr.bf16.mxu0 0
        %531 = vmatmul.mubr.bf16.gmra.mrb[0].mxu0 %v348
        %v532 = vpop.f32.mrb[0].mxu0
        %v533 = vadd.f32 %v272, %v532
        %v534 = vpop.f32.mrb[0].mxu0
        %v535 = vpop.f32.mrb[0].mxu0
        %v536 = vadd.f32 %v272, %v535
        %v537 = vpop.f32.mrb[0].mxu0
        %538 = vmatprep.mubr.bf16.mxu0 0
        %539 = vmatmul.mubr.bf16.gmra.mrb[0].mxu0 %v349
        %v540 = vpop.f32.mrb[0].mxu0
        %v541 = vadd.f32 %v272, %v540
        %v542 = vpop.f32.mrb[0].mxu0
        %v543 = vpop.f32.mrb[0].mxu0
        %v544 = vadd.f32 %v272, %v543
        %v545 = vpop.f32.mrb[0].mxu0
        %546 = vmatprep.mubr.bf16.mxu0 0
        %547 = vmatmul.mubr.bf16.gmra.mrb[0].mxu0 %v350
        %v548 = vpop.f32.mrb[0].mxu0
        %v549 = vadd.f32 %v272, %v548
        %v550 = vpop.f32.mrb[0].mxu0
        %v551 = vpop.f32.mrb[0].mxu0
        %v552 = vadd.f32 %v272, %v551
        %v553 = vpop.f32.mrb[0].mxu0
        %554 = vmatprep.mubr.bf16.mxu0 0
        %555 = vmatmul.mubr.bf16.gmra.mrb[0].mxu0 %v351
        %v556 = vpop.f32.mrb[0].mxu0
        %v557 = vadd.f32 %v272, %v556
        %v558 = vpop.f32.mrb[0].mxu0
        %v559 = vpop.f32.mrb[0].mxu0
        %v560 = vadd.f32 %v272, %v559
        %v561 = vpop.f32.mrb[0].mxu0
        %562 = vmatprep.mubr.bf16.mxu0 0
        %563 = vmatmul.mubr.bf16.gmra.mrb[0].mxu0 %v352
        %v564 = vpop.f32.mrb[0].mxu0
        %v565 = vadd.f32 %v272, %v564
        %v566 = vpop.f32.mrb[0].mxu0
        %v567 = vpop.f32.mrb[0].mxu0
        %v568 = vadd.f32 %v272, %v567
        %v569 = vpop.f32.mrb[0].mxu0
        %570 = vmatprep.mubr.bf16.mxu0 0
        %571 = vmatmul.mubr.bf16.gmra.mrb[0].mxu0 %v353
        %v572 = vpop.f32.mrb[0].mxu0
        %v573 = vadd.f32 %v272, %v572
        %v574 = vpop.f32.mrb[0].mxu0
        %v575 = vpop.f32.mrb[0].mxu0
        %v576 = vadd.f32 %v272, %v575
        %v577 = vpop.f32.mrb[0].mxu0
        %578 = vdwg.mxu0
        %v579 = vmax.f32 %v453, 0.0
        %v580 = vmax.f32 %v456, 0.0
        %v581 = vmax.f32 %v461, 0.0
        %v582 = vmax.f32 %v464, 0.0
        %v583 = vmax.f32 %v469, 0.0
        %v584 = vmax.f32 %v472, 0.0
        %v585 = vmax.f32 %v477, 0.0
        %v586 = vmax.f32 %v480, 0.0
        %v587 = vmax.f32 %v485, 0.0
        %v588 = vmax.f32 %v488, 0.0
        %v589 = vmax.f32 %v493, 0.0
        %v590 = vmax.f32 %v496, 0.0
        %v591 = vmax.f32 %v501, 0.0
        %v592 = vmax.f32 %v504, 0.0
        %v593 = vmax.f32 %v509, 0.0
        %v594 = vmax.f32 %v512, 0.0
        %v595 = vmax.f32 %v517, 0.0
        %v596 = vmax.f32 %v520, 0.0
        %v597 = vmax.f32 %v525, 0.0
        %v598 = vmax.f32 %v528, 0.0
        %v599 = vmax.f32 %v533, 0.0
        %v600 = vmax.f32 %v536, 0.0
        %v601 = vmax.f32 %v541, 0.0
        %v602 = vmax.f32 %v544, 0.0
        %v603 = vmax.f32 %v549, 0.0
        %v604 = vmax.f32 %v552, 0.0
        %v605 = vmax.f32 %v557, 0.0
        %v606 = vmax.f32 %v560, 0.0
        %v607 = vmax.f32 %v565, 0.0
        %v608 = vmax.f32 %v568, 0.0
        %v609 = vmax.f32 %v573, 0.0
        %v610 = vmax.f32 %v576, 0.0
        %v611 = vpack.c.bf16 %v580, %v579
        %v612 = vpack.c.bf16 %v582, %v581
        %v613 = vpack.c.bf16 %v584, %v583
        %v614 = vpack.c.bf16 %v586, %v585
        %v615 = vpack.c.bf16 %v588, %v587
        %v616 = vpack.c.bf16 %v590, %v589
        %v617 = vpack.c.bf16 %v592, %v591
        %v618 = vpack.c.bf16 %v594, %v593
        %v619 = vpack.c.bf16 %v596, %v595
        %v620 = vpack.c.bf16 %v598, %v597
        %v621 = vpack.c.bf16 %v600, %v599
        %v622 = vpack.c.bf16 %v602, %v601
        %v623 = vpack.c.bf16 %v604, %v603
        %v624 = vpack.c.bf16 %v606, %v605
        %v625 = vpack.c.bf16 %v608, %v607
        %v626 = vpack.c.bf16 %v610, %v609
        %v643 = vunpack.c.l.b16 %v611
        %v644 = vunpack.c.h.b16 %v611
        %v645 = vunpack.c.l.b16 %v612
        %v646 = vunpack.c.h.b16 %v612
        %v647 = vunpack.c.l.b16 %v613
        %v648 = vunpack.c.h.b16 %v613
        %v649 = vunpack.c.l.b16 %v614
        %v650 = vunpack.c.h.b16 %v614
        %v651 = vunpack.c.l.b16 %v615
        %v652 = vunpack.c.h.b16 %v615
        %v653 = vunpack.c.l.b16 %v616
        %v654 = vunpack.c.h.b16 %v616
        %v655 = vunpack.c.l.b16 %v617
        %v656 = vunpack.c.h.b16 %v617
        %v657 = vunpack.c.l.b16 %v618
        %v658 = vunpack.c.h.b16 %v618
        %v659 = vunpack.c.l.b16 %v619
        %v660 = vunpack.c.h.b16 %v619
        %v661 = vunpack.c.l.b16 %v620
        %v662 = vunpack.c.h.b16 %v620
        %v663 = vunpack.c.l.b16 %v621
        %v664 = vunpack.c.h.b16 %v621
        %v665 = vunpack.c.l.b16 %v622
        %v666 = vunpack.c.h.b16 %v622
        %v667 = vunpack.c.l.b16 %v623
        %v668 = vunpack.c.h.b16 %v623
        %v669 = vunpack.c.l.b16 %v624
        %v670 = vunpack.c.h.b16 %v624
        %v671 = vunpack.c.l.b16 %v625
        %v672 = vunpack.c.h.b16 %v625
        %v673 = vunpack.c.l.b16 %v626
        %v674 = vunpack.c.h.b16 %v626
        %v675 = vpack.c.b16 %v643, %v643
        %v676 = vpack.c.b16 %v644, %v644
        %v677 = vpack.c.b16 %v645, %v645
        %v678 = vpack.c.b16 %v646, %v646
        %v679 = vpack.c.b16 %v647, %v647
        %v680 = vpack.c.b16 %v648, %v648
        %v681 = vpack.c.b16 %v649, %v649
        %v682 = vpack.c.b16 %v650, %v650
        %v683 = vpack.c.b16 %v651, %v651
        %v684 = vpack.c.b16 %v652, %v652
        %v685 = vpack.c.b16 %v653, %v653
        %v686 = vpack.c.b16 %v654, %v654
        %v687 = vpack.c.b16 %v655, %v655
        %v688 = vpack.c.b16 %v656, %v656
        %v689 = vpack.c.b16 %v657, %v657
        %v690 = vpack.c.b16 %v658, %v658
        %v691 = vpack.c.b16 %v659, %v659
        %v692 = vpack.c.b16 %v660, %v660
        %v693 = vpack.c.b16 %v661, %v661
        %v694 = vpack.c.b16 %v662, %v662
        %v695 = vpack.c.b16 %v663, %v663
        %v696 = vpack.c.b16 %v664, %v664
        %v697 = vpack.c.b16 %v665, %v665
        %v698 = vpack.c.b16 %v666, %v666
        %v699 = vpack.c.b16 %v667, %v667
        %v700 = vpack.c.b16 %v668, %v668
        %v701 = vpack.c.b16 %v669, %v669
        %v702 = vpack.c.b16 %v670, %v670
        %v703 = vpack.c.b16 %v671, %v671
        %v704 = vpack.c.b16 %v672, %v672
        %v705 = vpack.c.b16 %v673, %v673
        %v706 = vpack.c.b16 %v674, %v674
        %739 = vst [vmem:[%s215] sm:$0xf] %v675
        %740 = vst [vmem:[%s215 + $0x4] sm:$0xf] %v676
        %741 = vst [vmem:[%s215 + $0x8] sm:$0xf] %v677
        %742 = vst [vmem:[%s215 + $0xc] sm:$0xf] %v678
        %743 = vst [vmem:[%s215 + $0x10] sm:$0xf] %v679
        %744 = vst [vmem:[%s215 + $0x14] sm:$0xf] %v680
        %745 = vst [vmem:[%s215 + $0x18] sm:$0xf] %v681
        %746 = vst [vmem:[%s215 + $0x1c] sm:$0xf] %v682
        %747 = vst [vmem:[%s215 + $0x20] sm:$0xf] %v683
        %748 = vst [vmem:[%s215 + $0x24] sm:$0xf] %v684
        %749 = vst [vmem:[%s215 + $0x28] sm:$0xf] %v685
        %750 = vst [vmem:[%s215 + $0x2c] sm:$0xf] %v686
        %751 = vst [vmem:[%s215 + $0x30] sm:$0xf] %v687
        %752 = vst [vmem:[%s215 + $0x34] sm:$0xf] %v688
        %753 = vst [vmem:[%s215 + $0x38] sm:$0xf] %v689
        %754 = vst [vmem:[%s215 + $0x3c] sm:$0xf] %v690
        %755 = vst [vmem:[%s215 + $0x40] sm:$0xf] %v691
        %756 = vst [vmem:[%s215 + $0x44] sm:$0xf] %v692
        %757 = vst [vmem:[%s215 + $0x48] sm:$0xf] %v693
        %758 = vst [vmem:[%s215 + $0x4c] sm:$0xf] %v694
        %759 = vst [vmem:[%s215 + $0x50] sm:$0xf] %v695
        %760 = vst [vmem:[%s215 + $0x54] sm:$0xf] %v696
        %761 = vst [vmem:[%s215 + $0x58] sm:$0xf] %v697
        %762 = vst [vmem:[%s215 + $0x5c] sm:$0xf] %v698
        %763 = vst [vmem:[%s215 + $0x60] sm:$0xf] %v699
        %764 = vst [vmem:[%s215 + $0x64] sm:$0xf] %v700
        %765 = vst [vmem:[%s215 + $0x68] sm:$0xf] %v701
        %766 = vst [vmem:[%s215 + $0x6c] sm:$0xf] %v702
        %767 = vst [vmem:[%s215 + $0x70] sm:$0xf] %v703
        %768 = vst [vmem:[%s215 + $0x74] sm:$0xf] %v704
        %769 = vst [vmem:[%s215 + $0x78] sm:$0xf] %v705
        %770 = vst [vmem:[%s215 + $0x7c] sm:$0xf] %v706
        %s771 = sand.u32 %s97, 1
        %s772 = scalar_lea.sflag [#allocation4], %s771
        %s773 = sand.u32 %s97, 1
        %s774 = smul.addr %s773, 128
        %s775 = scalar_lea.vmem [#allocation8], %s774
        // Predicated region
        $region45: #{tpu_custom_call.1} parent=31 // pred_check
          %p776 = pneg %p107
        $region46: #{tpu_custom_call.1} parent=31 // pred_check_branch
          %778 = sbr.rel (%p776) target = $region48
        $region47: #{tpu_custom_call.1} parent=31 // pred_region
          %s779 = smul.u32 32, %s21
          %s781 = ssub.s32 2048, 2048
          %782 = vsyncadd %s772, %s781
          %s783 = smul.addr %s779, 64
          %s784 = scalar_lea.hbm %s3, %s783
          %s785 = sshll.u32 %s775, 4
          %s786 = int_to_ptr.vmem [resolvable:$true] %s785
          %791 = dma.vmem_to_hbm [thread:$0]  %s786, 2048, %s784, %s772, 64, 64, 4
        $region48: #{tpu_custom_call.1} parent=31 // pred_fallthru
          _
      $region32: #{tpu_custom_call.1} parent=5 // pred_fallthru
        _
      %p792 = scmp.le.s32.totalorder 2, %s16
      // Predicated region
      $region49: #{tpu_custom_call.1} parent=5 // pred_check
        %p793 = pneg %p792
      $region50: #{tpu_custom_call.1} parent=5 // pred_check_branch
        %795 = sbr.rel (%p793) target = $region52
      $region51: #{tpu_custom_call.1} parent=5 // pred_region
        %s796 = ssub.s32 %s16, 2
        // Predicated region
        $region53: #{tpu_custom_call.1} parent=51 // pred_check
          %p797 = pneg %p113
        $region54: #{tpu_custom_call.1} parent=51 // pred_check_branch
          %799 = sbr.rel (%p797) target = $region56
        $region55: #{tpu_custom_call.1} parent=51 // pred_region
          %s800 = sand.u32 %s98, 1
          %s801 = scalar_lea.sflag [#allocation4], %s800
          %s802 = sand.u32 %s98, 1
          %s803 = smul.addr %s802, 128
          %s804 = scalar_lea.vmem [#allocation8], %s803
          %805 = dma.done %s801, 2048
        $region56: #{tpu_custom_call.1} parent=51 // pred_fallthru
          _
      $region52: #{tpu_custom_call.1} parent=5 // pred_fallthru
        _
    $region6: #{tpu_custom_call.1} parent=1 // loop_footer
      %s20 = sadd.s32 1, %s16
    $region7: #{tpu_custom_call.1} parent=1 // loop_footer_branch
      %15 = sbr.rel target = $region3
    $region8: #{tpu_custom_call.1} parent=1 // loop_exit
      _
    %806 = vsyncpa [#allocation3], 1
    %s807 = scalar_lea.sflag [#allocation3], 1
    %808 = vsyncpa %s807, 1
    %809 = vsyncpa [#allocation6], 1
    %810 = vsyncpa [#allocation4], 1
    %s811 = scalar_lea.sflag [#allocation4], 1
    %812 = vsyncpa %s811, 1

// kernel: tpu_custom_call.1
$region0: #{tpu_custom_call.1}
  #allocation0 [shape = 'u32[]', space=smem, size = 0x4, offset = 0x4, fixed_abs, tag = 'smem constant byte address 0x4 - core index']
  #allocation1 [shape = 'u32[144,128]{1,0:T(1,128)}', space=vmem, size = 0x12000, scoped, tag = 'internal scratch']
  %s0 = inlined_call_operand.hbm [shape: bf16[2048,128], index: 0, kind: input, shape index: {}]
  %s1 = inlined_call_operand.hbm [shape: bf16[128,128], index: 1, kind: input, shape index: {}]
  %s2 = inlined_call_operand.hbm [shape: f32[1,128], index: 2, kind: input, shape index: {}]
  %s3 = inlined_call_operand.hbm [shape: bf16[2048,128], index: 3, kind: output, shape index: {}]
  %s4 = sld [smem:[#allocation0]]
  $region57: #{tpu_custom_call.1} parent=0
    _
  %s6 = ssub.s32 1, %s4
  %s7 = scalar_select 0, %s6, %s4
  $region1: #{tpu_custom_call.1} parent=0
    #allocation2 [shape = 'u8[131072]{0}', space=vmem, size = 0x20000, scoped, tag = 'input window, operand 0']
    #allocation3 [shape = 's32[2]{0}', space=sflag, size = 0x8, scoped, tag = 'scoped memory for tpu_custom_call.1']
    #allocation4 [shape = 's32[2]{0}', space=sflag, size = 0x8, scoped, tag = 'scoped memory for tpu_custom_call.1']
    #allocation5 [shape = 'u8[32768]{0}', space=vmem, size = 0x8000, scoped, tag = 'input window, operand 1, single buffered']
    #allocation6 [shape = 's32[1]{0}', space=sflag, size = 0x4, scoped, tag = 'scoped memory for tpu_custom_call.1']
    #allocation7 [shape = 'u8[512]{0}', space=vmem, size = 0x400, scoped, tag = 'input window, operand 2, single buffered']
    #allocation8 [shape = 'u8[131072]{0}', space=vmem, size = 0x20000, scoped, tag = 'output window, operand 0']
    %8 = vsyncpa [#allocation3], 0
    %s9 = scalar_lea.sflag [#allocation3], 1
    %10 = vsyncpa %s9, 0
    %11 = vsyncpa [#allocation6], 0
    %12 = vsyncpa [#allocation4], 0
    %s13 = scalar_lea.sflag [#allocation4], 1
    %14 = vsyncpa %s13, 0
    loop: start=0, step=1, limit=10
    $region2: #{tpu_custom_call.1} parent=1 // loop_pre_header
      _
    $region3: #{tpu_custom_call.1} parent=1 // loop_header
      %s16 = sphi 0, %s20
      %p17 = scmp.ge.s32.totalorder %s16, 10
      %s26 = sphi 0, %s28
      %s29 = sphi 0, %s26
      %s30 = sphi 0, %s29
      %s46 = sphi 0, %s30
      %s50 = sphi 0, %s50
      %s52 = sphi 0, %s50
      %s53 = sphi 0, %s52
      %s67 = sphi 0, %s53
      %s71 = sphi 0, %s71
      %s73 = sphi 0, %s71
      %s74 = sphi 0, %s73
      %s88 = sphi 0, %s74
      %s94 = sphi 0, %s96
      %s97 = sphi 0, %s94
      %s98 = sphi 0, %s97
      %s114 = sphi 0, %s98
    $region4: #{tpu_custom_call.1} parent=1 // loop_header_branch
      %19 = sbr.rel (%p17) target = $region8
    $region5: #{tpu_custom_call.1} parent=1 // loop_body
      %s21 = ssub.s32 %s16, 1
      %s22 = ssub.s32 %s16, 2
      %s23 = sadd.s32 %s16, 1
      %s24 = ssub.s32 %s16, %s23
      %p25 = scmp.eq.s32.totalorder %s24, 0
      %s27 = sadd.s32 %s26, 1
      %s28 = scalar_select %p25, %s26, %s27
      %p31 = pneg %p25
      %p32 = scmp.eq.s32.totalorder %s16, 7
      %p33 = por %p31, %p32
      %p34 = scmp.ne.s32.totalorder %s26, %s29
      %p35 = scmp.eq.s32.totalorder %s16, 0
      %p36 = por %p34, %p35
      %p37 = scmp.ne.s32.totalorder %s26, %s29
      %p38 = scmp.eq.s32.totalorder %s21, 7
      %p39 = por %p37, %p38
      %p40 = scmp.ne.s32.totalorder %s29, %s30
      %p41 = scmp.eq.s32.totalorder %s21, 0
      %p42 = por %p40, %p41
      %p43 = scmp.ne.s32.totalorder %s29, %s30
      %p44 = scmp.eq.s32.totalorder %s22, 7
      %p45 = por %p43, %p44
      %p47 = scmp.ne.s32.totalorder %s30, %s46
      %p48 = scmp.eq.s32.totalorder %s22, 0
      %p49 = por %p47, %p48
      %s51 = sadd.s32 %s50, 1
      %p54 = scmp.eq.s32.totalorder %s16, 7
      %p55 = scmp.ne.s32.totalorder %s50, %s52
      %p56 = scmp.eq.s32.totalorder %s16, 0
      %p57 = por %p55, %p56
      %p58 = scmp.ne.s32.totalorder %s50, %s52
      %p59 = scmp.eq.s32.totalorder %s21, 7
      %p60 = por %p58, %p59
      %p61 = scmp.ne.s32.totalorder %s52, %s53
      %p62 = scmp.eq.s32.totalorder %s21, 0
      %p63 = por %p61, %p62
      %p64 = scmp.ne.s32.totalorder %s52, %s53
      %p65 = scmp.eq.s32.totalorder %s22, 7
      %p66 = por %p64, %p65
      %p68 = scmp.ne.s32.totalorder %s53, %s67
      %p69 = scmp.eq.s32.totalorder %s22, 0
      %p70 = por %p68, %p69
      %s72 = sadd.s32 %s71, 1
      %p75 = scmp.eq.s32.totalorder %s16, 7
      %p76 = scmp.ne.s32.totalorder %s71, %s73
      %p77 = scmp.eq.s32.totalorder %s16, 0
      %p78 = por %p76, %p77
      %p79 = scmp.ne.s32.totalorder %s71, %s73
      %p80 = scmp.eq.s32.totalorder %s21, 7
      %p81 = por %p79, %p80
      %p82 = scmp.ne.s32.totalorder %s73, %s74
      %p83 = scmp.eq.s32.totalorder %s21, 0
      %p84 = por %p82, %p83
      %p85 = scmp.ne.s32.totalorder %s73, %s74
      %p86 = scmp.eq.s32.totalorder %s22, 7
      %p87 = por %p85, %p86
      %p89 = scmp.ne.s32.totalorder %s74, %s88
      %p90 = scmp.eq.s32.totalorder %s22, 0
      %p91 = por %p89, %p90
      %s92 = ssub.s32 %s16, %s23
      %p93 = scmp.eq.s32.totalorder %s92, 0
      %s95 = sadd.s32 %s94, 1
      %s96 = scalar_select %p93, %s94, %s95
      %p99 = pneg %p93
      %p100 = scmp.eq.s32.totalorder %s16, 7
      %p101 = por %p99, %p100
      %p102 = scmp.ne.s32.totalorder %s94, %s97
      %p103 = scmp.eq.s32.totalorder %s16, 0
      %p104 = por %p102, %p103
      %p105 = scmp.ne.s32.totalorder %s94, %s97
      %p106 = scmp.eq.s32.totalorder %s21, 7
      %p107 = por %p105, %p106
      %p108 = scmp.ne.s32.totalorder %s97, %s98
      %p109 = scmp.eq.s32.totalorder %s21, 0
      %p110 = por %p108, %p109
      %p111 = scmp.ne.s32.totalorder %s97, %s98
      %p112 = scmp.eq.s32.totalorder %s22, 7
      %p113 = por %p111, %p112
      %p115 = scmp.ne.s32.totalorder %s98, %s114
      %p116 = scmp.eq.s32.totalorder %s22, 0
      %p117 = por %p115, %p116
      %p118 = scmp.le.s32.totalorder 1, %s16
      %p119 = scmp.lt.s32.totalorder %s16, 9
      %p120 = pnand %p118, %p119
      %p121 = pneg %p120
      // Predicated region
      $region9: #{tpu_custom_call.1} parent=5 // pred_check
        _
      $region10: #{tpu_custom_call.1} parent=5 // pred_check_branch
        %123 = sbr.rel (%p120) target = $region12
      $region11: #{tpu_custom_call.1} parent=5 // pred_region
        %s124 = ssub.s32 %s16, 1
        // Predicated region
        $region13: #{tpu_custom_call.1} parent=11 // pred_check
          %p125 = pneg %p63
        $region14: #{tpu_custom_call.1} parent=11 // pred_check_branch
          %127 = sbr.rel (%p125) target = $region16
        $region15: #{tpu_custom_call.1} parent=11 // pred_region
          %s129 = ssub.s32 1024, 1024
          %130 = vsyncadd [#allocation6], %s129
          %s131 = sshll.u32 [#allocation5], 4
          %s132 = int_to_ptr.vmem [resolvable:$true] %s131
          %137 = dma.hbm_to_vmem [thread:$0]  %s1, 1024, %s132, [#allocation6], 64, 64, 4
        $region16: #{tpu_custom_call.1} parent=11 // pred_fallthru
          _
        // Predicated region
        $region17: #{tpu_custom_call.1} parent=11 // pred_check
          %p138 = pneg %p84
        $region18: #{tpu_custom_call.1} parent=11 // pred_check_branch
          %140 = sbr.rel (%p138) target = $region20
        $region19: #{tpu_custom_call.1} parent=11 // pred_region
          %s142 = ssub.s32 16, 16
          %143 = vsyncadd [#allocation6], %s142
          %s145 = sshll.u32 [#allocation7], 4
          %s146 = int_to_ptr.vmem [resolvable:$true] %s145
          %148 = dma.hbm_to_vmem [thread:$0]  %s2, 16, %s146, [#allocation6]
        $region20: #{tpu_custom_call.1} parent=11 // pred_fallthru
          _
      $region12: #{tpu_custom_call.1} parent=5 // pred_fallthru
        _
      %p149 = scmp.lt.s32.totalorder %s16, 8
      // Predicated region
      $region21: #{tpu_custom_call.1} parent=5 // pred_check
        %p150 = pneg %p149
      $region22: #{tpu_custom_call.1} parent=5 // pred_check_branch
        %152 = sbr.rel (%p150) target = $region24
      $region23: #{tpu_custom_call.1} parent=5 // pred_region
        // Predicated region
        $region25: #{tpu_custom_call.1} parent=23 // pred_check
          %p153 = pneg %p36
        $region26: #{tpu_custom_call.1} parent=23 // pred_check_branch
          %155 = sbr.rel (%p153) target = $region28
        $region27: #{tpu_custom_call.1} parent=23 // pred_region
          %s156 = sand.u32 %s26, 1
          %s157 = scalar_lea.sflag [#allocation3], %s156
          %s158 = sand.u32 %s26, 1
          %s159 = smul.addr %s158, 128
          %s160 = scalar_lea.vmem [#allocation2], %s159
          %s161 = smul.u32 32, %s16
          %s163 = ssub.s32 2048, 2048
          %164 = vsyncadd %s157, %s163
          %s165 = smul.addr %s161, 64
          %s166 = scalar_lea.hbm %s0, %s165
          %s167 = sshll.u32 %s160, 4
          %s168 = int_to_ptr.vmem [resolvable:$true] %s167
          %173 = dma.hbm_to_vmem [thread:$0]  %s166, 2048, %s168, %s157, 64, 64, 4
        $region28: #{tpu_custom_call.1} parent=23 // pred_fallthru
          _
      $region24: #{tpu_custom_call.1} parent=5 // pred_fallthru
        _
      %p174 = scmp.le.s32.totalorder 1, %s16
      %p175 = scmp.lt.s32.totalorder %s16, 9
      %p176 = pnand %p174, %p175
      %p177 = pneg %p176
      // Predicated region
      $region29: #{tpu_custom_call.1} parent=5 // pred_check
        _
      $region30: #{tpu_custom_call.1} parent=5 // pred_check_branch
        %179 = sbr.rel (%p176) target = $region32
      $region31: #{tpu_custom_call.1} parent=5 // pred_region
        %s180 = ssub.s32 %s16, 1
        %s181 = sand.u32 %s29, 1
        %s182 = scalar_lea.sflag [#allocation3], %s181
        %s183 = sand.u32 %s29, 1
        %s184 = smul.addr %s183, 128
        %s185 = scalar_lea.vmem [#allocation2], %s184
        // Predicated region
        $region33: #{tpu_custom_call.1} parent=31 // pred_check
          %p186 = pneg %p42
        $region34: #{tpu_custom_call.1} parent=31 // pred_check_branch
          %188 = sbr.rel (%p186) target = $region36
        $region35: #{tpu_custom_call.1} parent=31 // pred_region
          %189 = dma.done %s182, 2048
        $region36: #{tpu_custom_call.1} parent=31 // pred_fallthru
          _
        // Predicated region
        $region37: #{tpu_custom_call.1} parent=31 // pred_check
          %p190 = pneg %p63
        $region38: #{tpu_custom_call.1} parent=31 // pred_check_branch
          %192 = sbr.rel (%p190) target = $region40
        $region39: #{tpu_custom_call.1} parent=31 // pred_region
          %193 = dma.done [#allocation6], 1024
        $region40: #{tpu_custom_call.1} parent=31 // pred_fallthru
          _
        // Predicated region
        $region41: #{tpu_custom_call.1} parent=31 // pred_check
          %p194 = pneg %p84
        $region42: #{tpu_custom_call.1} parent=31 // pred_check_branch
          %196 = sbr.rel (%p194) target = $region44
        $region43: #{tpu_custom_call.1} parent=31 // pred_region
          %197 = dma.done [#allocation6], 16
        $region44: #{tpu_custom_call.1} parent=31 // pred_fallthru
          _
        %s198 = sand.u32 %s29, 1
        %s199 = scalar_lea.sflag [#allocation3], %s198
        %s200 = sand.u32 %s29, 1
        %s201 = smul.addr %s200, 128
        %s202 = scalar_lea.vmem [#allocation2], %s201
        %p203 = pneg %p42
        %p204 = pneg %p39
        %p205 = pneg %p63
        %p206 = pneg %p60
        %p207 = pneg %p84
        %p208 = pneg %p81
        %p209 = pneg %p110
        %p210 = pneg %p107
        %s211 = sand.u32 %s97, 1
        %s212 = scalar_lea.sflag [#allocation4], %s211
        %s213 = sand.u32 %s97, 1
        %s214 = smul.addr %s213, 128
        %s215 = scalar_lea.vmem [#allocation8], %s214
        %s216 = smul.u32 32, %s21
        %s217 = smul.u32 32, %s21
        %v219 = vld [vmem:[%s185] sm:$0xf]
        %v220 = vld [vmem:[%s185 + $0x4] sm:$0xf]
        %v221 = vld [vmem:[%s185 + $0x8] sm:$0xf]
        %v222 = vld [vmem:[%s185 + $0xc] sm:$0xf]
        %v223 = vld [vmem:[%s185 + $0x10] sm:$0xf]
        %v224 = vld [vmem:[%s185 + $0x14] sm:$0xf]
        %v225 = vld [vmem:[%s185 + $0x18] sm:$0xf]
        %v226 = vld [vmem:[%s185 + $0x1c] sm:$0xf]
        %v227 = vld [vmem:[%s185 + $0x20] sm:$0xf]
        %v228 = vld [vmem:[%s185 + $0x24] sm:$0xf]
        %v229 = vld [vmem:[%s185 + $0x28] sm:$0xf]
        %v230 = vld [vmem:[%s185 + $0x2c] sm:$0xf]
        %v231 = vld [vmem:[%s185 + $0x30] sm:$0xf]
        %v232 = vld [vmem:[%s185 + $0x34] sm:$0xf]
        %v233 = vld [vmem:[%s185 + $0x38] sm:$0xf]
        %v234 = vld [vmem:[%s185 + $0x3c] sm:$0xf]
        %v235 = vld [vmem:[%s185 + $0x40] sm:$0xf]
        %v236 = vld [vmem:[%s185 + $0x44] sm:$0xf]
        %v237 = vld [vmem:[%s185 + $0x48] sm:$0xf]
        %v238 = vld [vmem:[%s185 + $0x4c] sm:$0xf]
        %v239 = vld [vmem:[%s185 + $0x50] sm:$0xf]
        %v240 = vld [vmem:[%s185 + $0x54] sm:$0xf]
        %v241 = vld [vmem:[%s185 + $0x58] sm:$0xf]
        %v242 = vld [vmem:[%s185 + $0x5c] sm:$0xf]
        %v243 = vld [vmem:[%s185 + $0x60] sm:$0xf]
        %v244 = vld [vmem:[%s185 + $0x64] sm:$0xf]
        %v245 = vld [vmem:[%s185 + $0x68] sm:$0xf]
        %v246 = vld [vmem:[%s185 + $0x6c] sm:$0xf]
        %v247 = vld [vmem:[%s185 + $0x70] sm:$0xf]
        %v248 = vld [vmem:[%s185 + $0x74] sm:$0xf]
        %v249 = vld [vmem:[%s185 + $0x78] sm:$0xf]
        %v250 = vld [vmem:[%s185 + $0x7c] sm:$0xf]
        %v251 = vld [vmem:[#allocation5] sm:$0xf]
        %v252 = vld [vmem:[#allocation5 + $0x4] sm:$0xf]
        %v253 = vld [vmem:[#allocation5 + $0x8] sm:$0xf]
        %v254 = vld [vmem:[#allocation5 + $0xc] sm:$0xf]
        %v255 = vld [vmem:[#allocation5 + $0x10] sm:$0xf]
        %v256 = vld [vmem:[#allocation5 + $0x14] sm:$0xf]
        %v257 = vld [vmem:[#allocation5 + $0x18] sm:$0xf]
        %v258 = vld [vmem:[#allocation5 + $0x1c] sm:$0xf]
        %v259 = vld [vmem:[#allocation5 + $0x20] sm:$0xf]
        %v260 = vld [vmem:[#allocation5 + $0x24] sm:$0xf]
        %v261 = vld [vmem:[#allocation5 + $0x28] sm:$0xf]
        %v262 = vld [vmem:[#allocation5 + $0x2c] sm:$0xf]
        %v263 = vld [vmem:[#allocation5 + $0x30] sm:$0xf]
        %v264 = vld [vmem:[#allocation5 + $0x34] sm:$0xf]
        %v265 = vld [vmem:[#allocation5 + $0x38] sm:$0xf]
        %v266 = vld [vmem:[#allocation5 + $0x3c] sm:$0xf]
        %v267 = vld [vmem:[#allocation7] sm:$0x1]
        %v269 = vlaneseq
        %v270 = vshrl.u32 %v269, 7
        %v271 = vsub.s32 0, %v270
        %v272 = vrot.slane %v267, %v271
        %v306 = vunpack.c.l.b16 %v219
        %v307 = vunpack.c.l.b16 %v220
        %v308 = vunpack.c.l.b16 %v221
        %v309 = vunpack.c.l.b16 %v222
        %v310 = vunpack.c.l.b16 %v223
        %v311 = vunpack.c.l.b16 %v224
        %v312 = vunpack.c.l.b16 %v225
        %v313 = vunpack.c.l.b16 %v226
        %v314 = vunpack.c.l.b16 %v227
        %v315 = vunpack.c.l.b16 %v228
        %v316 = vunpack.c.l.b16 %v229
        %v317 = vunpack.c.l.b16 %v230
        %v318 = vunpack.c.l.b16 %v231
        %v319 = vunpack.c.l.b16 %v232
        %v320 = vunpack.c.l.b16 %v233
        %v321 = vunpack.c.l.b16 %v234
        %v322 = vunpack.c.l.b16 %v235
        %v323 = vunpack.c.l.b16 %v236
        %v324 = vunpack.c.l.b16 %v237
        %v325 = vunpack.c.l.b16 %v238
        %v326 = vunpack.c.l.b16 %v239
        %v327 = vunpack.c.l.b16 %v240
        %v328 = vunpack.c.l.b16 %v241
        %v329 = vunpack.c.l.b16 %v242
        %v330 = vunpack.c.l.b16 %v243
        %v331 = vunpack.c.l.b16 %v244
        %v332 = vunpack.c.l.b16 %v245
        %v333 = vunpack.c.l.b16 %v246
        %v334 = vunpack.c.l.b16 %v247
        %v335 = vunpack.c.l.b16 %v248
        %v336 = vunpack.c.l.b16 %v249
        %v337 = vunpack.c.l.b16 %v250
        %v338 = vpack.c.b16 %v307, %v306
        %v339 = vpack.c.b16 %v309, %v308
        %v340 = vpack.c.b16 %v311, %v310
        %v341 = vpack.c.b16 %v313, %v312
        %v342 = vpack.c.b16 %v315, %v314
        %v343 = vpack.c.b16 %v317, %v316
        %v344 = vpack.c.b16 %v319, %v318
        %v345 = vpack.c.b16 %v321, %v320
        %v346 = vpack.c.b16 %v323, %v322
        %v347 = vpack.c.b16 %v325, %v324
        %v348 = vpack.c.b16 %v327, %v326
        %v349 = vpack.c.b16 %v329, %v328
        %v350 = vpack.c.b16 %v331, %v330
        %v351 = vpack.c.b16 %v333, %v332
        %v352 = vpack.c.b16 %v335, %v334
        %v353 = vpack.c.b16 %v337, %v336
        %v386 = vunpack.c.l.b16 %v251
        %v387 = vunpack.c.l.b16 %v252
        %v388 = vunpack.c.l.b16 %v253
        %v389 = vunpack.c.l.b16 %v254
        %v390 = vunpack.c.l.b16 %v255
        %v391 = vunpack.c.l.b16 %v256
        %v392 = vunpack.c.l.b16 %v257
        %v393 = vunpack.c.l.b16 %v258
        %v394 = vunpack.c.l.b16 %v259
        %v395 = vunpack.c.l.b16 %v260
        %v396 = vunpack.c.l.b16 %v261
        %v397 = vunpack.c.l.b16 %v262
        %v398 = vunpack.c.l.b16 %v263
        %v399 = vunpack.c.l.b16 %v264
        %v400 = vunpack.c.l.b16 %v265
        %v401 = vunpack.c.l.b16 %v266
        %v402 = vpack.c.b16 %v387, %v386
        %v403 = vpack.c.b16 %v389, %v388
        %v404 = vpack.c.b16 %v391, %v390
        %v405 = vpack.c.b16 %v393, %v392
        %v406 = vpack.c.b16 %v395, %v394
        %v407 = vpack.c.b16 %v397, %v396
        %v408 = vpack.c.b16 %v399, %v398
        %v409 = vpack.c.b16 %v401, %v400
        %418 = vmatprep.subr.bf16.mxu0 0
        %419 = vmatpush1.bf16.msra.mxu0 %v402
        %420 = vmatprep.subr.bf16.mxu0 0
        %421 = vmatpush1.bf16.msra.mxu0 %v403
        %422 = vmatprep.subr.bf16.mxu0 0
        %423 = vmatpush1.bf16.msra.mxu0 %v404
        %424 = vmatprep.subr.bf16.mxu0 0
        %425 = vmatpush1.bf16.msra.mxu0 %v405
        %426 = vmatprep.subr.bf16.mxu0 0
        %427 = vmatpush1.bf16.msra.mxu0 %v406
        %428 = vmatprep.subr.bf16.mxu0 0
        %429 = vmatpush1.bf16.msra.mxu0 %v407
        %430 = vmatprep.subr.bf16.mxu0 0
        %431 = vmatpush1.bf16.msra.mxu0 %v408
        %432 = vmatprep.subr.bf16.mxu0 0
        %433 = vmatpush1.bf16.msra.mxu0 %v409
        %434 = vmatprep.subr.bf16.mxu0 0
        %435 = vmatpush1.bf16.msra.mxu0 0
        %436 = vmatprep.subr.bf16.mxu0 0
        %437 = vmatpush1.bf16.msra.mxu0 0
        %438 = vmatprep.subr.bf16.mxu0 0
        %439 = vmatpush1.bf16.msra.mxu0 0
        %440 = vmatprep.subr.bf16.mxu0 0
        %441 = vmatpush1.bf16.msra.mxu0 0
        %442 = vmatprep.subr.bf16.mxu0 0
        %443 = vmatpush1.bf16.msra.mxu0 0
        %444 = vmatprep.subr.bf16.mxu0 0
        %445 = vmatpush1.bf16.msra.mxu0 0
        %446 = vmatprep.subr.bf16.mxu0 0
        %447 = vmatpush1.bf16.msra.mxu0 0
        %448 = vmatprep.subr.bf16.mxu0 0
        %449 = vmatpush1.bf16.msra.mxu0 0
        %450 = vmatprep.mubr.bf16.mxu0 0
        %451 = vmatmul.mubr.bf16.gmra.mrb[0].mxu0 %v338
        %v452 = vpop.f32.mrb[0].mxu0
        %v453 = vadd.f32 %v272, %v452
        %v454 = vpop.f32.mrb[0].mxu0
        %v455 = vpop.f32.mrb[0].mxu0
        %v456 = vadd.f32 %v272, %v455
        %v457 = vpop.f32.mrb[0].mxu0
        %458 = vmatprep.mubr.bf16.mxu0 0
        %459 = vmatmul.mubr.bf16.gmra.mrb[0].mxu0 %v339
        %v460 = vpop.f32.mrb[0].mxu0
        %v461 = vadd.f32 %v272, %v460
        %v462 = vpop.f32.mrb[0].mxu0
        %v463 = vpop.f32.mrb[0].mxu0
        %v464 = vadd.f32 %v272, %v463
        %v465 = vpop.f32.mrb[0].mxu0
        %466 = vmatprep.mubr.bf16.mxu0 0
        %467 = vmatmul.mubr.bf16.gmra.mrb[0].mxu0 %v340
        %v468 = vpop.f32.mrb[0].mxu0
        %v469 = vadd.f32 %v272, %v468
        %v470 = vpop.f32.mrb[0].mxu0
        %v471 = vpop.f32.mrb[0].mxu0
        %v472 = vadd.f32 %v272, %v471
        %v473 = vpop.f32.mrb[0].mxu0
        %474 = vmatprep.mubr.bf16.mxu0 0
        %475 = vmatmul.mubr.bf16.gmra.mrb[0].mxu0 %v341
        %v476 = vpop.f32.mrb[0].mxu0
        %v477 = vadd.f32 %v272, %v476
        %v478 = vpop.f32.mrb[0].mxu0
        %v479 = vpop.f32.mrb[0].mxu0
        %v480 = vadd.f32 %v272, %v479
        %v481 = vpop.f32.mrb[0].mxu0
        %482 = vmatprep.mubr.bf16.mxu0 0
        %483 = vmatmul.mubr.bf16.gmra.mrb[0].mxu0 %v342
        %v484 = vpop.f32.mrb[0].mxu0
        %v485 = vadd.f32 %v272, %v484
        %v486 = vpop.f32.mrb[0].mxu0
        %v487 = vpop.f32.mrb[0].mxu0
        %v488 = vadd.f32 %v272, %v487
        %v489 = vpop.f32.mrb[0].mxu0
        %490 = vmatprep.mubr.bf16.mxu0 0
        %491 = vmatmul.mubr.bf16.gmra.mrb[0].mxu0 %v343
        %v492 = vpop.f32.mrb[0].mxu0
        %v493 = vadd.f32 %v272, %v492
        %v494 = vpop.f32.mrb[0].mxu0
        %v495 = vpop.f32.mrb[0].mxu0
        %v496 = vadd.f32 %v272, %v495
        %v497 = vpop.f32.mrb[0].mxu0
        %498 = vmatprep.mubr.bf16.mxu0 0
        %499 = vmatmul.mubr.bf16.gmra.mrb[0].mxu0 %v344
        %v500 = vpop.f32.mrb[0].mxu0
        %v501 = vadd.f32 %v272, %v500
        %v502 = vpop.f32.mrb[0].mxu0
        %v503 = vpop.f32.mrb[0].mxu0
        %v504 = vadd.f32 %v272, %v503
        %v505 = vpop.f32.mrb[0].mxu0
        %506 = vmatprep.mubr.bf16.mxu0 0
        %507 = vmatmul.mubr.bf16.gmra.mrb[0].mxu0 %v345
        %v508 = vpop.f32.mrb[0].mxu0
        %v509 = vadd.f32 %v272, %v508
        %v510 = vpop.f32.mrb[0].mxu0
        %v511 = vpop.f32.mrb[0].mxu0
        %v512 = vadd.f32 %v272, %v511
        %v513 = vpop.f32.mrb[0].mxu0
        %514 = vmatprep.mubr.bf16.mxu0 0
        %515 = vmatmul.mubr.bf16.gmra.mrb[0].mxu0 %v346
        %v516 = vpop.f32.mrb[0].mxu0
        %v517 = vadd.f32 %v272, %v516
        %v518 = vpop.f32.mrb[0].mxu0
        %v519 = vpop.f32.mrb[0].mxu0
        %v520 = vadd.f32 %v272, %v519
        %v521 = vpop.f32.mrb[0].mxu0
        %522 = vmatprep.mubr.bf16.mxu0 0
        %523 = vmatmul.mubr.bf16.gmra.mrb[0].mxu0 %v347
        %v524 = vpop.f32.mrb[0].mxu0
        %v525 = vadd.f32 %v272, %v524
        %v526 = vpop.f32.mrb[0].mxu0
        %v527 = vpop.f32.mrb[0].mxu0
        %v528 = vadd.f32 %v272, %v527
        %v529 = vpop.f32.mrb[0].mxu0
        %530 = vmatprep.mubr.bf16.mxu0 0
        %531 = vmatmul.mubr.bf16.gmra.mrb[0].mxu0 %v348
        %v532 = vpop.f32.mrb[0].mxu0
        %v533 = vadd.f32 %v272, %v532
        %v534 = vpop.f32.mrb[0].mxu0
        %v535 = vpop.f32.mrb[0].mxu0
        %v536 = vadd.f32 %v272, %v535
        %v537 = vpop.f32.mrb[0].mxu0
        %538 = vmatprep.mubr.bf16.mxu0 0
        %539 = vmatmul.mubr.bf16.gmra.mrb[0].mxu0 %v349
        %v540 = vpop.f32.mrb[0].mxu0
        %v541 = vadd.f32 %v272, %v540
        %v542 = vpop.f32.mrb[0].mxu0
        %v543 = vpop.f32.mrb[0].mxu0
        %v544 = vadd.f32 %v272, %v543
        %v545 = vpop.f32.mrb[0].mxu0
        %546 = vmatprep.mubr.bf16.mxu0 0
        %547 = vmatmul.mubr.bf16.gmra.mrb[0].mxu0 %v350
        %v548 = vpop.f32.mrb[0].mxu0
        %v549 = vadd.f32 %v272, %v548
        %v550 = vpop.f32.mrb[0].mxu0
        %v551 = vpop.f32.mrb[0].mxu0
        %v552 = vadd.f32 %v272, %v551
        %v553 = vpop.f32.mrb[0].mxu0
        %554 = vmatprep.mubr.bf16.mxu0 0
        %555 = vmatmul.mubr.bf16.gmra.mrb[0].mxu0 %v351
        %v556 = vpop.f32.mrb[0].mxu0
        %v557 = vadd.f32 %v272, %v556
        %v558 = vpop.f32.mrb[0].mxu0
        %v559 = vpop.f32.mrb[0].mxu0
        %v560 = vadd.f32 %v272, %v559
        %v561 = vpop.f32.mrb[0].mxu0
        %562 = vmatprep.mubr.bf16.mxu0 0
        %563 = vmatmul.mubr.bf16.gmra.mrb[0].mxu0 %v352
        %v564 = vpop.f32.mrb[0].mxu0
        %v565 = vadd.f32 %v272, %v564
        %v566 = vpop.f32.mrb[0].mxu0
        %v567 = vpop.f32.mrb[0].mxu0
        %v568 = vadd.f32 %v272, %v567
        %v569 = vpop.f32.mrb[0].mxu0
        %570 = vmatprep.mubr.bf16.mxu0 0
        %571 = vmatmul.mubr.bf16.gmra.mrb[0].mxu0 %v353
        %v572 = vpop.f32.mrb[0].mxu0
        %v573 = vadd.f32 %v272, %v572
        %v574 = vpop.f32.mrb[0].mxu0
        %v575 = vpop.f32.mrb[0].mxu0
        %v576 = vadd.f32 %v272, %v575
        %v577 = vpop.f32.mrb[0].mxu0
        %578 = vdwg.mxu0
        %v579 = vmax.f32 %v453, 0.0
        %v580 = vmax.f32 %v456, 0.0
        %v581 = vmax.f32 %v461, 0.0
        %v582 = vmax.f32 %v464, 0.0
        %v583 = vmax.f32 %v469, 0.0
        %v584 = vmax.f32 %v472, 0.0
        %v585 = vmax.f32 %v477, 0.0
        %v586 = vmax.f32 %v480, 0.0
        %v587 = vmax.f32 %v485, 0.0
        %v588 = vmax.f32 %v488, 0.0
        %v589 = vmax.f32 %v493, 0.0
        %v590 = vmax.f32 %v496, 0.0
        %v591 = vmax.f32 %v501, 0.0
        %v592 = vmax.f32 %v504, 0.0
        %v593 = vmax.f32 %v509, 0.0
        %v594 = vmax.f32 %v512, 0.0
        %v595 = vmax.f32 %v517, 0.0
        %v596 = vmax.f32 %v520, 0.0
        %v597 = vmax.f32 %v525, 0.0
        %v598 = vmax.f32 %v528, 0.0
        %v599 = vmax.f32 %v533, 0.0
        %v600 = vmax.f32 %v536, 0.0
        %v601 = vmax.f32 %v541, 0.0
        %v602 = vmax.f32 %v544, 0.0
        %v603 = vmax.f32 %v549, 0.0
        %v604 = vmax.f32 %v552, 0.0
        %v605 = vmax.f32 %v557, 0.0
        %v606 = vmax.f32 %v560, 0.0
        %v607 = vmax.f32 %v565, 0.0
        %v608 = vmax.f32 %v568, 0.0
        %v609 = vmax.f32 %v573, 0.0
        %v610 = vmax.f32 %v576, 0.0
        %v611 = vpack.c.bf16 %v580, %v579
        %v612 = vpack.c.bf16 %v582, %v581
        %v613 = vpack.c.bf16 %v584, %v583
        %v614 = vpack.c.bf16 %v586, %v585
        %v615 = vpack.c.bf16 %v588, %v587
        %v616 = vpack.c.bf16 %v590, %v589
        %v617 = vpack.c.bf16 %v592, %v591
        %v618 = vpack.c.bf16 %v594, %v593
        %v619 = vpack.c.bf16 %v596, %v595
        %v620 = vpack.c.bf16 %v598, %v597
        %v621 = vpack.c.bf16 %v600, %v599
        %v622 = vpack.c.bf16 %v602, %v601
        %v623 = vpack.c.bf16 %v604, %v603
        %v624 = vpack.c.bf16 %v606, %v605
        %v625 = vpack.c.bf16 %v608, %v607
        %v626 = vpack.c.bf16 %v610, %v609
        %v643 = vunpack.c.l.b16 %v611
        %v644 = vunpack.c.h.b16 %v611
        %v645 = vunpack.c.l.b16 %v612
        %v646 = vunpack.c.h.b16 %v612
        %v647 = vunpack.c.l.b16 %v613
        %v648 = vunpack.c.h.b16 %v613
        %v649 = vunpack.c.l.b16 %v614
        %v650 = vunpack.c.h.b16 %v614
        %v651 = vunpack.c.l.b16 %v615
        %v652 = vunpack.c.h.b16 %v615
        %v653 = vunpack.c.l.b16 %v616
        %v654 = vunpack.c.h.b16 %v616
        %v655 = vunpack.c.l.b16 %v617
        %v656 = vunpack.c.h.b16 %v617
        %v657 = vunpack.c.l.b16 %v618
        %v658 = vunpack.c.h.b16 %v618
        %v659 = vunpack.c.l.b16 %v619
        %v660 = vunpack.c.h.b16 %v619
        %v661 = vunpack.c.l.b16 %v620
        %v662 = vunpack.c.h.b16 %v620
        %v663 = vunpack.c.l.b16 %v621
        %v664 = vunpack.c.h.b16 %v621
        %v665 = vunpack.c.l.b16 %v622
        %v666 = vunpack.c.h.b16 %v622
        %v667 = vunpack.c.l.b16 %v623
        %v668 = vunpack.c.h.b16 %v623
        %v669 = vunpack.c.l.b16 %v624
        %v670 = vunpack.c.h.b16 %v624
        %v671 = vunpack.c.l.b16 %v625
        %v672 = vunpack.c.h.b16 %v625
        %v673 = vunpack.c.l.b16 %v626
        %v674 = vunpack.c.h.b16 %v626
        %v675 = vpack.c.b16 %v643, %v643
        %v676 = vpack.c.b16 %v644, %v644
        %v677 = vpack.c.b16 %v645, %v645
        %v678 = vpack.c.b16 %v646, %v646
        %v679 = vpack.c.b16 %v647, %v647
        %v680 = vpack.c.b16 %v648, %v648
        %v681 = vpack.c.b16 %v649, %v649
        %v682 = vpack.c.b16 %v650, %v650
        %v683 = vpack.c.b16 %v651, %v651
        %v684 = vpack.c.b16 %v652, %v652
        %v685 = vpack.c.b16 %v653, %v653
        %v686 = vpack.c.b16 %v654, %v654
        %v687 = vpack.c.b16 %v655, %v655
        %v688 = vpack.c.b16 %v656, %v656
        %v689 = vpack.c.b16 %v657, %v657
        %v690 = vpack.c.b16 %v658, %v658
        %v691 = vpack.c.b16 %v659, %v659
        %v692 = vpack.c.b16 %v660, %v660
        %v693 = vpack.c.b16 %v661, %v661
        %v694 = vpack.c.b16 %v662, %v662
        %v695 = vpack.c.b16 %v663, %v663
        %v696 = vpack.c.b16 %v664, %v664
        %v697 = vpack.c.b16 %v665, %v665
        %v698 = vpack.c.b16 %v666, %v666
        %v699 = vpack.c.b16 %v667, %v667
        %v700 = vpack.c.b16 %v668, %v668
        %v701 = vpack.c.b16 %v669, %v669
        %v702 = vpack.c.b16 %v670, %v670
        %v703 = vpack.c.b16 %v671, %v671
        %v704 = vpack.c.b16 %v672, %v672
        %v705 = vpack.c.b16 %v673, %v673
        %v706 = vpack.c.b16 %v674, %v674
        %739 = vst [vmem:[%s215] sm:$0xf] %v675
        %740 = vst [vmem:[%s215 + $0x4] sm:$0xf] %v676
        %741 = vst [vmem:[%s215 + $0x8] sm:$0xf] %v677
        %742 = vst [vmem:[%s215 + $0xc] sm:$0xf] %v678
        %743 = vst [vmem:[%s215 + $0x10] sm:$0xf] %v679
        %744 = vst [vmem:[%s215 + $0x14] sm:$0xf] %v680
        %745 = vst [vmem:[%s215 + $0x18] sm:$0xf] %v681
        %746 = vst [vmem:[%s215 + $0x1c] sm:$0xf] %v682
        %747 = vst [vmem:[%s215 + $0x20] sm:$0xf] %v683
        %748 = vst [vmem:[%s215 + $0x24] sm:$0xf] %v684
        %749 = vst [vmem:[%s215 + $0x28] sm:$0xf] %v685
        %750 = vst [vmem:[%s215 + $0x2c] sm:$0xf] %v686
        %751 = vst [vmem:[%s215 + $0x30] sm:$0xf] %v687
        %752 = vst [vmem:[%s215 + $0x34] sm:$0xf] %v688
        %753 = vst [vmem:[%s215 + $0x38] sm:$0xf] %v689
        %754 = vst [vmem:[%s215 + $0x3c] sm:$0xf] %v690
        %755 = vst [vmem:[%s215 + $0x40] sm:$0xf] %v691
        %756 = vst [vmem:[%s215 + $0x44] sm:$0xf] %v692
        %757 = vst [vmem:[%s215 + $0x48] sm:$0xf] %v693
        %758 = vst [vmem:[%s215 + $0x4c] sm:$0xf] %v694
        %759 = vst [vmem:[%s215 + $0x50] sm:$0xf] %v695
        %760 = vst [vmem:[%s215 + $0x54] sm:$0xf] %v696
        %761 = vst [vmem:[%s215 + $0x58] sm:$0xf] %v697
        %762 = vst [vmem:[%s215 + $0x5c] sm:$0xf] %v698
        %763 = vst [vmem:[%s215 + $0x60] sm:$0xf] %v699
        %764 = vst [vmem:[%s215 + $0x64] sm:$0xf] %v700
        %765 = vst [vmem:[%s215 + $0x68] sm:$0xf] %v701
        %766 = vst [vmem:[%s215 + $0x6c] sm:$0xf] %v702
        %767 = vst [vmem:[%s215 + $0x70] sm:$0xf] %v703
        %768 = vst [vmem:[%s215 + $0x74] sm:$0xf] %v704
        %769 = vst [vmem:[%s215 + $0x78] sm:$0xf] %v705
        %770 = vst [vmem:[%s215 + $0x7c] sm:$0xf] %v706
        %s771 = sand.u32 %s97, 1
        %s772 = scalar_lea.sflag [#allocation4], %s771
        %s773 = sand.u32 %s97, 1
        %s774 = smul.addr %s773, 128
        %s775 = scalar_lea.vmem [#allocation8], %s774
        // Predicated region
        $region45: #{tpu_custom_call.1} parent=31 // pred_check
          %p776 = pneg %p107
        $region46: #{tpu_custom_call.1} parent=31 // pred_check_branch
          %778 = sbr.rel (%p776) target = $region48
        $region47: #{tpu_custom_call.1} parent=31 // pred_region
          %s779 = smul.u32 32, %s21
          %s781 = ssub.s32 2048, 2048
          %782 = vsyncadd %s772, %s781
          %s783 = smul.addr %s779, 64
          %s784 = scalar_lea.hbm %s3, %s783
          %s785 = sshll.u32 %s775, 4
          %s786 = int_to_ptr.vmem [resolvable:$true] %s785
          %791 = dma.vmem_to_hbm [thread:$0]  %s786, 2048, %s784, %s772, 64, 64, 4
        $region48: #{tpu_custom_call.1} parent=31 // pred_fallthru
          _
      $region32: #{tpu_custom_call.1} parent=5 // pred_fallthru
        _
      %p792 = scmp.le.s32.totalorder 2, %s16
      // Predicated region
      $region49: #{tpu_custom_call.1} parent=5 // pred_check
        %p793 = pneg %p792
      $region50: #{tpu_custom_call.1} parent=5 // pred_check_branch
        %795 = sbr.rel (%p793) target = $region52
      $region51: #{tpu_custom_call.1} parent=5 // pred_region
        %s796 = ssub.s32 %s16, 2
        // Predicated region
        $region53: #{tpu_custom_call.1} parent=51 // pred_check
          %p797 = pneg %p113
        $region54: #{tpu_custom_call.1} parent=51 // pred_check_branch
          %799 = sbr.rel (%p797) target = $region56
        $region55: #{tpu_custom_call.1} parent=51 // pred_region
          %s800 = sand.u32 %s98, 1
          %s801 = scalar_lea.sflag [#allocation4], %s800
          %s802 = sand.u32 %s98, 1
          %s803 = smul.addr %s802, 128
          %s804 = scalar_lea.vmem [#allocation8], %s803
          %805 = dma.done %s801, 2048
        $region56: #{tpu_custom_call.1} parent=51 // pred_fallthru
          _
      $region52: #{tpu_custom_call.1} parent=5 // pred_fallthru
        _
    $region6: #{tpu_custom_call.1} parent=1 // loop_footer
      %s20 = sadd.s32 1, %s16
    $region7: #{tpu_custom_call.1} parent=1 // loop_footer_branch
      %15 = sbr.rel target = $region3
    $region8: #{tpu_custom_call.1} parent=1 // loop_exit
      _
    %806 = vsyncpa [#allocation3], 1
    %s807 = scalar_lea.sflag [#allocation3], 1
    %808 = vsyncpa %s807, 1
    %809 = vsyncpa [#allocation6], 1
    %810 = vsyncpa [#allocation4], 1
    %s811 = scalar_lea.sflag [#allocation4], 1
    %812 = vsyncpa %s811, 1

</llo_original>
